<compile_context>
chip_gen: v6e
topology: v6e:2x2x1
jax: 0.10.0
libtpu: 0.0.40
codegen_flags: <defaults>
</compile_context>

<pallas_src>
import functools

import jax
import jax.numpy as jnp
from jax.experimental import pallas as pl
from jax.experimental.pallas import tpu as pltpu


def _round_up(x, m):
    return (x + m - 1) // m * m


def _gru_kernel(x_ref, h0_ref, wih_ref, whh_ref, bih_ref, bhh_ref,
                out_ref, h_scratch):
    """Process one (Tc, Bc, Hp) chunk of timesteps of a PyTorch-semantics GRU.

    x_ref   : (Tc, Bc, Hp) bf16   embedded inputs for this time chunk
    h0_ref  : (Bc, Hp)     f32    initial hidden state (batch block)
    wih_ref : (Hp, 3*Hp)   bf16   input->hidden weights, transposed, gate
                                  order [r, z, n], each gate 128-aligned
    whh_ref : (Hp, 3*Hp)   bf16   hidden->hidden weights, same packing
    bih_ref : (1, 3*Hp)    f32    input bias (gate-aligned)
    bhh_ref : (1, 3*Hp)    f32    hidden bias (gate-aligned)
    out_ref : (Tc, Bc, Hp) f32    outputs for this time chunk
    h_scratch: VMEM (Bc, Hp) f32  hidden state carried across time chunks
    """
    c = pl.program_id(1)  # time-chunk index (innermost, "arbitrary")

    @pl.when(c == 0)
    def _():
        h_scratch[...] = h0_ref[...]

    Tc, Bc, Hp = x_ref.shape

    # Hoisted input projection: one MXU matmul with M = Tc*Bc rows for the
    # whole chunk (instead of an M=Bc matmul every timestep).
    x = x_ref[...].reshape(Tc * Bc, Hp)                    # bf16
    gi = jnp.dot(x, wih_ref[...],
                 preferred_element_type=jnp.float32) + bih_ref[...]
    gi = gi.reshape(Tc, Bc, 3 * Hp)                        # f32

    whh = whh_ref[...]                                     # bf16, resident
    # Hoist the bias broadcast out of the unrolled loop (no CSE in-loop).
    bhh = jnp.broadcast_to(bhh_ref[...], (Bc, 3 * Hp))

    # Keep h as a local value across the unrolled recurrence; write scratch
    # back once at the end of the chunk.
    h = h_scratch[...]                                     # f32 (Bc, Hp)
    for t in range(Tc):                                    # fully unrolled
        gh = jnp.dot(h.astype(jnp.bfloat16), whh,
                     preferred_element_type=jnp.float32) + bhh
        g = gi[t]                                          # (Bc, 3*Hp), static slice
        # Gate slices are 128-lane aligned (each gate is a full Hp block).
        r = jax.nn.sigmoid(g[:, 0:Hp] + gh[:, 0:Hp])
        z = jax.nn.sigmoid(g[:, Hp:2 * Hp] + gh[:, Hp:2 * Hp])
        n = jnp.tanh(g[:, 2 * Hp:3 * Hp] + r * gh[:, 2 * Hp:3 * Hp])
        h = (1.0 - z) * n + z * h
        out_ref[t] = h.astype(out_ref.dtype)

    h_scratch[...] = h


def gru_pallas(x, h0, w_ih, w_hh, b_ih, b_hh, *, block_t=None, block_b=None):
    """Single-layer GRU over the full sequence (PyTorch nn.GRU semantics).

    x    : (T, B, H) f32
    h0   : (B, H)    f32
    w_ih : (3H, H)   f32  (PyTorch layout, gate order [r, z, n])
    w_hh : (3H, H)   f32
    b_ih : (3H,)     f32
    b_hh : (3H,)     f32
    returns (output (T, B, H) f32, h_final (B, H) f32)
    """
    T, B, H = x.shape
    Hp = _round_up(H, 128)     # lane-dense last dim
    Bp = _round_up(B, 8)       # sublane-dense batch

    if block_b is None:
        # On v7x with Bp >= 16, set block_b = Bp // 2 to shard the batch
        # across the two TensorCores via the leading "parallel" axis.
        block_b = Bp
    if block_t is None:
        block_t = max(1, min(T, 16))   # timesteps per grid step
    Tp = _round_up(T, block_t)
    assert Bp % block_b == 0

    # Pack weights: transpose to (Hp, 3*Hp) with each gate in its own
    # 128-aligned column block; zero-pad so padded h-columns stay zero.
    def pack_w(w):  # (3H, H) -> (Hp, 3*Hp) bf16
        wp = jnp.zeros((Hp, 3 * Hp), jnp.float32)
        for g in range(3):
            wp = wp.at[:H, g * Hp:g * Hp + H].set(w[g * H:(g + 1) * H, :].T)
        return wp.astype(jnp.bfloat16)

    def pack_b(b):  # (3H,) -> (1, 3*Hp) f32
        bp = jnp.zeros((1, 3 * Hp), jnp.float32)
        for g in range(3):
            bp = bp.at[0, g * Hp:g * Hp + H].set(b[g * H:(g + 1) * H])
        return bp

    wih_p = pack_w(w_ih)
    whh_p = pack_w(w_hh)
    bih_p = pack_b(b_ih)
    bhh_p = pack_b(b_hh)

    x_p = jnp.zeros((Tp, Bp, Hp), jnp.bfloat16)
    x_p = x_p.at[:T, :B, :H].set(x.astype(jnp.bfloat16))
    h0_p = jnp.zeros((Bp, Hp), jnp.float32).at[:B, :H].set(h0)

    grid = (Bp // block_b, Tp // block_t)

    # NOTE: for large H, add pipeline_mode=pl.Buffered(1) on the constant
    # weight/bias specs to avoid double-buffering resident weights (VMEM
    # pressure on v7x/v5e); unnecessary at these shapes.
    out = pl.pallas_call(
        _gru_kernel,
        out_shape=jax.ShapeDtypeStruct((Tp, Bp, Hp), jnp.float32),
        grid_spec=pltpu.PrefetchScalarGridSpec(
            num_scalar_prefetch=0,
            grid=grid,
            in_specs=[
                pl.BlockSpec((block_t, block_b, Hp), lambda b, c: (c, b, 0)),  # x chunk
                pl.BlockSpec((block_b, Hp), lambda b, c: (b, 0)),              # h0
                pl.BlockSpec((Hp, 3 * Hp), lambda b, c: (0, 0)),               # W_ih^T
                pl.BlockSpec((Hp, 3 * Hp), lambda b, c: (0, 0)),               # W_hh^T
                pl.BlockSpec((1, 3 * Hp), lambda b, c: (0, 0)),                # b_ih
                pl.BlockSpec((1, 3 * Hp), lambda b, c: (0, 0)),                # b_hh
            ],
            out_specs=pl.BlockSpec((block_t, block_b, Hp),
                                   lambda b, c: (c, b, 0)),
            scratch_shapes=[pltpu.VMEM((block_b, Hp), jnp.float32)],
        ),
        compiler_params=pltpu.CompilerParams(
            dimension_semantics=("parallel", "arbitrary"),
            vmem_limit_bytes=32 * 1024 * 1024,
        ),
    )(x_p, h0_p, wih_p, whh_p, bih_p, bhh_p)

    out_real = out[:T, :B, :H]
    h_final = out_real[T - 1]          # final hidden = last real output row
    return out_real, h_final


def encoder_rnn_forward(params, input_ids, hidden, n_layers=1):
    """Equivalent of EncoderRNN.forward.

    input_ids : (T, B) int32 token indices
    hidden    : (1, B, H) f32
    returns (output (T, B, H), hidden (1, B, H))
    """
    # Embedding lookup (glue — plain JAX gather).
    embedded = jnp.take(params["embedding"], input_ids, axis=0)  # (T, B, H)
    output = embedded.astype(jnp.float32)
    h = hidden[0]                                                # (B, H)
    # NOTE: like the reference module, the SAME GRU weights are re-applied
    # n_layers times (not a true multi-layer GRU with per-layer params).
    for _ in range(n_layers):
        output, h = gru_pallas(output, h,
                               params["w_ih"], params["w_hh"],
                               params["b_ih"], params["b_hh"])
    return output, h[None]


def encoder_rnn_reference(params, input_ids, hidden, n_layers=1):
    """Pure-JAX f32 reference (PyTorch GRU semantics) for correctness check."""
    x = jnp.take(params["embedding"], input_ids, axis=0).astype(jnp.float32)
    h = hidden[0]
    H = h.shape[-1]
    w_ih, w_hh = params["w_ih"], params["w_hh"]
    b_ih, b_hh = params["b_ih"], params["b_hh"]

    def step(h, x_t):
        gi = x_t @ w_ih.T + b_ih
        gh = h @ w_hh.T + b_hh
        r = jax.nn.sigmoid(gi[:, :H] + gh[:, :H])
        z = jax.nn.sigmoid(gi[:, H:2 * H] + gh[:, H:2 * H])
        n = jnp.tanh(gi[:, 2 * H:] + r * gh[:, 2 * H:])
        h_new = (1.0 - z) * n + z * h
        return h_new, h_new

    out = x
    for _ in range(n_layers):
        h, out = jax.lax.scan(step, h, out)
    return out, h[None]


def init_params(key, input_size, hidden_size):
    """Deterministic parameter init (uniform, PyTorch-style ranges)."""
    k_emb, k_wih, k_whh, k_bih, k_bhh = jax.random.split(key, 5)
    bound = 1.0 / jnp.sqrt(hidden_size)
    return {
        "embedding": jax.random.normal(k_emb, (input_size, hidden_size),
                                       jnp.float32),
        "w_ih": jax.random.uniform(k_wih, (3 * hidden_size, hidden_size),
                                   jnp.float32, -bound, bound),
        "w_hh": jax.random.uniform(k_whh, (3 * hidden_size, hidden_size),
                                   jnp.float32, -bound, bound),
        "b_ih": jax.random.uniform(k_bih, (3 * hidden_size,),
                                   jnp.float32, -bound, bound),
        "b_hh": jax.random.uniform(k_bhh, (3 * hidden_size,),
                                   jnp.float32, -bound, bound),
    }


if __name__ == "__main__":
    # Small shapes consistent with the module: vocab=16, hidden=32, seq=8, batch=2.
    input_size = 16
    hidden_size = 32
    seq_len = 8
    batch = 2
    n_layers = 1

    key = jax.random.PRNGKey(0)
    k_params, k_ids = jax.random.split(key)
    params = init_params(k_params, input_size, hidden_size)

    input_ids = jax.random.randint(k_ids, (seq_len, batch), 0, input_size,
                                   dtype=jnp.int32)
    # EncoderRNN.initHidden gives zeros of shape (1, 1, H); generalize batch.
    hidden0 = jnp.zeros((1, batch, hidden_size), jnp.float32)

    fwd = jax.jit(functools.partial(encoder_rnn_forward, n_layers=n_layers))
    output, hidden = fwd(params, input_ids, hidden0)
    jax.block_until_ready((output, hidden))

    assert output.shape == (seq_len, batch, hidden_size)
    assert hidden.shape == (1, batch, hidden_size)

    # Correctness vs pure-JAX f32 reference (bf16 weights -> loose tolerance).
    ref_out, ref_hidden = encoder_rnn_reference(params, input_ids, hidden0,
                                                n_layers=n_layers)
    assert jnp.allclose(output, ref_out, atol=3e-2, rtol=3e-2)
    assert jnp.allclose(hidden, ref_hidden, atol=3e-2, rtol=3e-2)

    print("KERNEL_OK")
</pallas_src>

<mosaic_0001>
module attributes {stable_mosaic.version = 11 : i64} {
  func.func @_gru_kernel(%arg0: i32, %arg1: i32, %arg2: memref<8x8x128xbf16, #tpu.memory_space<vmem>>, %arg3: memref<8x128xf32, #tpu.memory_space<vmem>>, %arg4: memref<128x384xbf16, #tpu.memory_space<vmem>>, %arg5: memref<128x384xbf16, #tpu.memory_space<vmem>>, %arg6: memref<1x384xf32, #tpu.memory_space<vmem>>, %arg7: memref<1x384xf32, #tpu.memory_space<vmem>>, %arg8: memref<8x8x128xf32, #tpu.memory_space<vmem>>, %arg9: memref<8x128xf32, #tpu.memory_space<vmem>>) attributes {dimension_semantics = [#tpu.dimension_semantics<parallel>, #tpu.dimension_semantics<arbitrary>], iteration_bounds = array<i64: 1, 1>, scalar_prefetch = 0 : i64, scratch_operands = 1 : i64, tpu.core_type = #tpu.core_type<tc>, window_params = [{transform_indices = @transform_0, window_bounds = array<i64: 8, 8, 128>}, {transform_indices = @transform_1, window_bounds = array<i64: 8, 128>}, {pipeline_mode = #tpu.pipeline_mode<synchronous>, transform_indices = @transform_2, window_bounds = array<i64: 128, 384>}, {pipeline_mode = #tpu.pipeline_mode<synchronous>, transform_indices = @transform_3, window_bounds = array<i64: 128, 384>}, {pipeline_mode = #tpu.pipeline_mode<synchronous>, transform_indices = @transform_4, window_bounds = array<i64: 1, 384>}, {pipeline_mode = #tpu.pipeline_mode<synchronous>, transform_indices = @transform_5, window_bounds = array<i64: 1, 384>}, {transform_indices = @transform_6, window_bounds = array<i64: 8, 8, 128>}]} {
    %c0_i32 = arith.constant 0 : i32
    %0 = arith.cmpi eq, %arg1, %c0_i32 : i32
    %1 = arith.extui %0 : i1 to i32
    %c0_i32_0 = arith.constant 0 : i32
    %2 = arith.cmpi ne, %1, %c0_i32_0 : i32
    scf.if %2 {
      %c0_64 = arith.constant 0 : index
      %c0_65 = arith.constant 0 : index
      %289 = vector.load %arg3[%c0_64, %c0_65] : memref<8x128xf32, #tpu.memory_space<vmem>>, vector<8x128xf32>
      %c0_66 = arith.constant 0 : index
      %c0_67 = arith.constant 0 : index
      %290 = vector.load %arg9[%c0_66, %c0_67] : memref<8x128xf32, #tpu.memory_space<vmem>>, vector<8x128xf32>
      tpu.vector_store %arg9[%c0_66, %c0_67], %289 {strides = array<i32>} : memref<8x128xf32, #tpu.memory_space<vmem>>, vector<8x128xf32>,
    } else {
    }
    %c0 = arith.constant 0 : index
    %c0_1 = arith.constant 0 : index
    %c0_2 = arith.constant 0 : index
    %3 = vector.load %arg2[%c0, %c0_1, %c0_2] : memref<8x8x128xbf16, #tpu.memory_space<vmem>>, vector<8x8x128xbf16>
    %4 = vector.shape_cast %3 : vector<8x8x128xbf16> to vector<64x128xbf16>
    %c0_3 = arith.constant 0 : index
    %c0_4 = arith.constant 0 : index
    %5 = vector.load %arg4[%c0_3, %c0_4] : memref<128x384xbf16, #tpu.memory_space<vmem>>, vector<128x384xbf16>
    %cst = arith.constant dense<0.000000e+00> : vector<64x384xf32>
    %6 = tpu.matmul %4, %5, %cst {dimension_numbers = #tpu.dot_dimension_numbers<[1], [0], [0], [1], [0, 0, 1, 1], [], []>} : vector<64x128xbf16>, vector<128x384xbf16>, vector<64x384xf32> -> vector<64x384xf32>
    %c0_5 = arith.constant 0 : index
    %c0_6 = arith.constant 0 : index
    %7 = vector.load %arg6[%c0_5, %c0_6] : memref<1x384xf32, #tpu.memory_space<vmem>>, vector<1x384xf32>
    %8 = vector.broadcast %7 : vector<1x384xf32> to vector<64x384xf32>
    %9 = arith.addf %6, %8 : vector<64x384xf32>
    %10 = vector.shape_cast %9 : vector<64x384xf32> to vector<8x8x384xf32>
    %c0_7 = arith.constant 0 : index
    %c0_8 = arith.constant 0 : index
    %11 = vector.load %arg5[%c0_7, %c0_8] : memref<128x384xbf16, #tpu.memory_space<vmem>>, vector<128x384xbf16>
    %c0_9 = arith.constant 0 : index
    %c0_10 = arith.constant 0 : index
    %12 = vector.load %arg7[%c0_9, %c0_10] : memref<1x384xf32, #tpu.memory_space<vmem>>, vector<1x384xf32>
    %13 = vector.shape_cast %12 : vector<1x384xf32> to vector<1x384xf32>
    %14 = vector.broadcast %13 : vector<1x384xf32> to vector<8x384xf32>
    %c0_11 = arith.constant 0 : index
    %c0_12 = arith.constant 0 : index
    %15 = vector.load %arg9[%c0_11, %c0_12] : memref<8x128xf32, #tpu.memory_space<vmem>>, vector<8x128xf32>
    %16 = arith.truncf %15 : vector<8x128xf32> to vector<8x128xbf16>
    %cst_13 = arith.constant dense<0.000000e+00> : vector<8x384xf32>
    %17 = tpu.matmul %16, %11, %cst_13 {dimension_numbers = #tpu.dot_dimension_numbers<[1], [0], [0], [1], [0, 0, 1, 1], [], []>} : vector<8x128xbf16>, vector<128x384xbf16>, vector<8x384xf32> -> vector<8x384xf32>
    %18 = arith.addf %17, %14 : vector<8x384xf32>
    %19 = vector.extract_strided_slice %10 {offsets = [0, 0, 0], sizes = [1, 8, 384], strides = [1, 1, 1]} : vector<8x8x384xf32> to vector<1x8x384xf32>
    %20 = vector.shape_cast %19 : vector<1x8x384xf32> to vector<8x384xf32>
    %21 = vector.extract_strided_slice %20 {offsets = [0, 0], sizes = [8, 128], strides = [1, 1]} : vector<8x384xf32> to vector<8x128xf32>
    %22 = vector.extract_strided_slice %18 {offsets = [0, 0], sizes = [8, 128], strides = [1, 1]} : vector<8x384xf32> to vector<8x128xf32>
    %23 = arith.addf %21, %22 : vector<8x128xf32>
    %24 = arith.negf %23 : vector<8x128xf32>
    %25 = math.exp %24 : vector<8x128xf32>
    %cst_14 = arith.constant 1.000000e+00 : f32
    %26 = vector.broadcast %cst_14 : f32 to vector<8x128xf32>
    %27 = arith.addf %26, %25 : vector<8x128xf32>
    %28 = arith.divf %26, %27 : vector<8x128xf32>
    %29 = vector.extract_strided_slice %20 {offsets = [0, 128], sizes = [8, 128], strides = [1, 1]} : vector<8x384xf32> to vector<8x128xf32>
    %30 = vector.extract_strided_slice %18 {offsets = [0, 128], sizes = [8, 128], strides = [1, 1]} : vector<8x384xf32> to vector<8x128xf32>
    %31 = arith.addf %29, %30 : vector<8x128xf32>
    %32 = arith.negf %31 : vector<8x128xf32>
    %33 = math.exp %32 : vector<8x128xf32>
    %cst_15 = arith.constant 1.000000e+00 : f32
    %34 = vector.broadcast %cst_15 : f32 to vector<8x128xf32>
    %35 = arith.addf %34, %33 : vector<8x128xf32>
    %36 = arith.divf %34, %35 : vector<8x128xf32>
    %37 = vector.extract_strided_slice %20 {offsets = [0, 256], sizes = [8, 128], strides = [1, 1]} : vector<8x384xf32> to vector<8x128xf32>
    %38 = vector.extract_strided_slice %18 {offsets = [0, 256], sizes = [8, 128], strides = [1, 1]} : vector<8x384xf32> to vector<8x128xf32>
    %39 = arith.mulf %28, %38 : vector<8x128xf32>
    %40 = arith.addf %37, %39 : vector<8x128xf32>
    %41 = math.tanh %40 : vector<8x128xf32>
    %cst_16 = arith.constant 1.000000e+00 : f32
    %42 = vector.broadcast %cst_16 : f32 to vector<8x128xf32>
    %43 = arith.subf %42, %36 : vector<8x128xf32>
    %44 = arith.mulf %43, %41 : vector<8x128xf32>
    %45 = arith.mulf %36, %15 : vector<8x128xf32>
    %46 = arith.addf %44, %45 : vector<8x128xf32>
    %c0_17 = arith.constant 0 : index
    %c0_18 = arith.constant 0 : index
    %c0_19 = arith.constant 0 : index
    %47 = vector.load %arg8[%c0_17, %c0_18, %c0_19] : memref<8x8x128xf32, #tpu.memory_space<vmem>>, vector<1x8x128xf32>
    %48 = vector.shape_cast %47 : vector<1x8x128xf32> to vector<8x128xf32>
    %49 = vector.shape_cast %46 : vector<8x128xf32> to vector<1x8x128xf32>
    tpu.vector_store %arg8[%c0_17, %c0_18, %c0_19], %49 {strides = array<i32>} : memref<8x8x128xf32, #tpu.memory_space<vmem>>, vector<1x8x128xf32>,
    %50 = arith.truncf %46 : vector<8x128xf32> to vector<8x128xbf16>
    %cst_20 = arith.constant dense<0.000000e+00> : vector<8x384xf32>
    %51 = tpu.matmul %50, %11, %cst_20 {dimension_numbers = #tpu.dot_dimension_numbers<[1], [0], [0], [1], [0, 0, 1, 1], [], []>} : vector<8x128xbf16>, vector<128x384xbf16>, vector<8x384xf32> -> vector<8x384xf32>
    %52 = arith.addf %51, %14 : vector<8x384xf32>
    %53 = vector.extract_strided_slice %10 {offsets = [1, 0, 0], sizes = [1, 8, 384], strides = [1, 1, 1]} : vector<8x8x384xf32> to vector<1x8x384xf32>
    %54 = vector.shape_cast %53 : vector<1x8x384xf32> to vector<8x384xf32>
    %55 = vector.extract_strided_slice %54 {offsets = [0, 0], sizes = [8, 128], strides = [1, 1]} : vector<8x384xf32> to vector<8x128xf32>
    %56 = vector.extract_strided_slice %52 {offsets = [0, 0], sizes = [8, 128], strides = [1, 1]} : vector<8x384xf32> to vector<8x128xf32>
    %57 = arith.addf %55, %56 : vector<8x128xf32>
    %58 = arith.negf %57 : vector<8x128xf32>
    %59 = math.exp %58 : vector<8x128xf32>
    %cst_21 = arith.constant 1.000000e+00 : f32
    %60 = vector.broadcast %cst_21 : f32 to vector<8x128xf32>
    %61 = arith.addf %60, %59 : vector<8x128xf32>
    %62 = arith.divf %60, %61 : vector<8x128xf32>
    %63 = vector.extract_strided_slice %54 {offsets = [0, 128], sizes = [8, 128], strides = [1, 1]} : vector<8x384xf32> to vector<8x128xf32>
    %64 = vector.extract_strided_slice %52 {offsets = [0, 128], sizes = [8, 128], strides = [1, 1]} : vector<8x384xf32> to vector<8x128xf32>
    %65 = arith.addf %63, %64 : vector<8x128xf32>
    %66 = arith.negf %65 : vector<8x128xf32>
    %67 = math.exp %66 : vector<8x128xf32>
    %cst_22 = arith.constant 1.000000e+00 : f32
    %68 = vector.broadcast %cst_22 : f32 to vector<8x128xf32>
    %69 = arith.addf %68, %67 : vector<8x128xf32>
    %70 = arith.divf %68, %69 : vector<8x128xf32>
    %71 = vector.extract_strided_slice %54 {offsets = [0, 256], sizes = [8, 128], strides = [1, 1]} : vector<8x384xf32> to vector<8x128xf32>
    %72 = vector.extract_strided_slice %52 {offsets = [0, 256], sizes = [8, 128], strides = [1, 1]} : vector<8x384xf32> to vector<8x128xf32>
    %73 = arith.mulf %62, %72 : vector<8x128xf32>
    %74 = arith.addf %71, %73 : vector<8x128xf32>
    %75 = math.tanh %74 : vector<8x128xf32>
    %cst_23 = arith.constant 1.000000e+00 : f32
    %76 = vector.broadcast %cst_23 : f32 to vector<8x128xf32>
    %77 = arith.subf %76, %70 : vector<8x128xf32>
    %78 = arith.mulf %77, %75 : vector<8x128xf32>
    %79 = arith.mulf %70, %46 : vector<8x128xf32>
    %80 = arith.addf %78, %79 : vector<8x128xf32>
    %c1 = arith.constant 1 : index
    %c0_24 = arith.constant 0 : index
    %c0_25 = arith.constant 0 : index
    %81 = vector.load %arg8[%c1, %c0_24, %c0_25] : memref<8x8x128xf32, #tpu.memory_space<vmem>>, vector<1x8x128xf32>
    %82 = vector.shape_cast %81 : vector<1x8x128xf32> to vector<8x128xf32>
    %83 = vector.shape_cast %80 : vector<8x128xf32> to vector<1x8x128xf32>
    tpu.vector_store %arg8[%c1, %c0_24, %c0_25], %83 {strides = array<i32>} : memref<8x8x128xf32, #tpu.memory_space<vmem>>, vector<1x8x128xf32>,
    %84 = arith.truncf %80 : vector<8x128xf32> to vector<8x128xbf16>
    %cst_26 = arith.constant dense<0.000000e+00> : vector<8x384xf32>
    %85 = tpu.matmul %84, %11, %cst_26 {dimension_numbers = #tpu.dot_dimension_numbers<[1], [0], [0], [1], [0, 0, 1, 1], [], []>} : vector<8x128xbf16>, vector<128x384xbf16>, vector<8x384xf32> -> vector<8x384xf32>
    %86 = arith.addf %85, %14 : vector<8x384xf32>
    %87 = vector.extract_strided_slice %10 {offsets = [2, 0, 0], sizes = [1, 8, 384], strides = [1, 1, 1]} : vector<8x8x384xf32> to vector<1x8x384xf32>
    %88 = vector.shape_cast %87 : vector<1x8x384xf32> to vector<8x384xf32>
    %89 = vector.extract_strided_slice %88 {offsets = [0, 0], sizes = [8, 128], strides = [1, 1]} : vector<8x384xf32> to vector<8x128xf32>
    %90 = vector.extract_strided_slice %86 {offsets = [0, 0], sizes = [8, 128], strides = [1, 1]} : vector<8x384xf32> to vector<8x128xf32>
    %91 = arith.addf %89, %90 : vector<8x128xf32>
    %92 = arith.negf %91 : vector<8x128xf32>
    %93 = math.exp %92 : vector<8x128xf32>
    %cst_27 = arith.constant 1.000000e+00 : f32
    %94 = vector.broadcast %cst_27 : f32 to vector<8x128xf32>
    %95 = arith.addf %94, %93 : vector<8x128xf32>
    %96 = arith.divf %94, %95 : vector<8x128xf32>
    %97 = vector.extract_strided_slice %88 {offsets = [0, 128], sizes = [8, 128], strides = [1, 1]} : vector<8x384xf32> to vector<8x128xf32>
    %98 = vector.extract_strided_slice %86 {offsets = [0, 128], sizes = [8, 128], strides = [1, 1]} : vector<8x384xf32> to vector<8x128xf32>
    %99 = arith.addf %97, %98 : vector<8x128xf32>
    %100 = arith.negf %99 : vector<8x128xf32>
    %101 = math.exp %100 : vector<8x128xf32>
    %cst_28 = arith.constant 1.000000e+00 : f32
    %102 = vector.broadcast %cst_28 : f32 to vector<8x128xf32>
    %103 = arith.addf %102, %101 : vector<8x128xf32>
    %104 = arith.divf %102, %103 : vector<8x128xf32>
    %105 = vector.extract_strided_slice %88 {offsets = [0, 256], sizes = [8, 128], strides = [1, 1]} : vector<8x384xf32> to vector<8x128xf32>
    %106 = vector.extract_strided_slice %86 {offsets = [0, 256], sizes = [8, 128], strides = [1, 1]} : vector<8x384xf32> to vector<8x128xf32>
    %107 = arith.mulf %96, %106 : vector<8x128xf32>
    %108 = arith.addf %105, %107 : vector<8x128xf32>
    %109 = math.tanh %108 : vector<8x128xf32>
    %cst_29 = arith.constant 1.000000e+00 : f32
    %110 = vector.broadcast %cst_29 : f32 to vector<8x128xf32>
    %111 = arith.subf %110, %104 : vector<8x128xf32>
    %112 = arith.mulf %111, %109 : vector<8x128xf32>
    %113 = arith.mulf %104, %80 : vector<8x128xf32>
    %114 = arith.addf %112, %113 : vector<8x128xf32>
    %c2 = arith.constant 2 : index
    %c0_30 = arith.constant 0 : index
    %c0_31 = arith.constant 0 : index
    %115 = vector.load %arg8[%c2, %c0_30, %c0_31] : memref<8x8x128xf32, #tpu.memory_space<vmem>>, vector<1x8x128xf32>
    %116 = vector.shape_cast %115 : vector<1x8x128xf32> to vector<8x128xf32>
    %117 = vector.shape_cast %114 : vector<8x128xf32> to vector<1x8x128xf32>
    tpu.vector_store %arg8[%c2, %c0_30, %c0_31], %117 {strides = array<i32>} : memref<8x8x128xf32, #tpu.memory_space<vmem>>, vector<1x8x128xf32>,
    %118 = arith.truncf %114 : vector<8x128xf32> to vector<8x128xbf16>
    %cst_32 = arith.constant dense<0.000000e+00> : vector<8x384xf32>
    %119 = tpu.matmul %118, %11, %cst_32 {dimension_numbers = #tpu.dot_dimension_numbers<[1], [0], [0], [1], [0, 0, 1, 1], [], []>} : vector<8x128xbf16>, vector<128x384xbf16>, vector<8x384xf32> -> vector<8x384xf32>
    %120 = arith.addf %119, %14 : vector<8x384xf32>
    %121 = vector.extract_strided_slice %10 {offsets = [3, 0, 0], sizes = [1, 8, 384], strides = [1, 1, 1]} : vector<8x8x384xf32> to vector<1x8x384xf32>
    %122 = vector.shape_cast %121 : vector<1x8x384xf32> to vector<8x384xf32>
    %123 = vector.extract_strided_slice %122 {offsets = [0, 0], sizes = [8, 128], strides = [1, 1]} : vector<8x384xf32> to vector<8x128xf32>
    %124 = vector.extract_strided_slice %120 {offsets = [0, 0], sizes = [8, 128], strides = [1, 1]} : vector<8x384xf32> to vector<8x128xf32>
    %125 = arith.addf %123, %124 : vector<8x128xf32>
    %126 = arith.negf %125 : vector<8x128xf32>
    %127 = math.exp %126 : vector<8x128xf32>
    %cst_33 = arith.constant 1.000000e+00 : f32
    %128 = vector.broadcast %cst_33 : f32 to vector<8x128xf32>
    %129 = arith.addf %128, %127 : vector<8x128xf32>
    %130 = arith.divf %128, %129 : vector<8x128xf32>
    %131 = vector.extract_strided_slice %122 {offsets = [0, 128], sizes = [8, 128], strides = [1, 1]} : vector<8x384xf32> to vector<8x128xf32>
    %132 = vector.extract_strided_slice %120 {offsets = [0, 128], sizes = [8, 128], strides = [1, 1]} : vector<8x384xf32> to vector<8x128xf32>
    %133 = arith.addf %131, %132 : vector<8x128xf32>
    %134 = arith.negf %133 : vector<8x128xf32>
    %135 = math.exp %134 : vector<8x128xf32>
    %cst_34 = arith.constant 1.000000e+00 : f32
    %136 = vector.broadcast %cst_34 : f32 to vector<8x128xf32>
    %137 = arith.addf %136, %135 : vector<8x128xf32>
    %138 = arith.divf %136, %137 : vector<8x128xf32>
    %139 = vector.extract_strided_slice %122 {offsets = [0, 256], sizes = [8, 128], strides = [1, 1]} : vector<8x384xf32> to vector<8x128xf32>
    %140 = vector.extract_strided_slice %120 {offsets = [0, 256], sizes = [8, 128], strides = [1, 1]} : vector<8x384xf32> to vector<8x128xf32>
    %141 = arith.mulf %130, %140 : vector<8x128xf32>
    %142 = arith.addf %139, %141 : vector<8x128xf32>
    %143 = math.tanh %142 : vector<8x128xf32>
    %cst_35 = arith.constant 1.000000e+00 : f32
    %144 = vector.broadcast %cst_35 : f32 to vector<8x128xf32>
    %145 = arith.subf %144, %138 : vector<8x128xf32>
    %146 = arith.mulf %145, %143 : vector<8x128xf32>
    %147 = arith.mulf %138, %114 : vector<8x128xf32>
    %148 = arith.addf %146, %147 : vector<8x128xf32>
    %c3 = arith.constant 3 : index
    %c0_36 = arith.constant 0 : index
    %c0_37 = arith.constant 0 : index
    %149 = vector.load %arg8[%c3, %c0_36, %c0_37] : memref<8x8x128xf32, #tpu.memory_space<vmem>>, vector<1x8x128xf32>
    %150 = vector.shape_cast %149 : vector<1x8x128xf32> to vector<8x128xf32>
    %151 = vector.shape_cast %148 : vector<8x128xf32> to vector<1x8x128xf32>
    tpu.vector_store %arg8[%c3, %c0_36, %c0_37], %151 {strides = array<i32>} : memref<8x8x128xf32, #tpu.memory_space<vmem>>, vector<1x8x128xf32>,
    %152 = arith.truncf %148 : vector<8x128xf32> to vector<8x128xbf16>
    %cst_38 = arith.constant dense<0.000000e+00> : vector<8x384xf32>
    %153 = tpu.matmul %152, %11, %cst_38 {dimension_numbers = #tpu.dot_dimension_numbers<[1], [0], [0], [1], [0, 0, 1, 1], [], []>} : vector<8x128xbf16>, vector<128x384xbf16>, vector<8x384xf32> -> vector<8x384xf32>
    %154 = arith.addf %153, %14 : vector<8x384xf32>
    %155 = vector.extract_strided_slice %10 {offsets = [4, 0, 0], sizes = [1, 8, 384], strides = [1, 1, 1]} : vector<8x8x384xf32> to vector<1x8x384xf32>
    %156 = vector.shape_cast %155 : vector<1x8x384xf32> to vector<8x384xf32>
    %157 = vector.extract_strided_slice %156 {offsets = [0, 0], sizes = [8, 128], strides = [1, 1]} : vector<8x384xf32> to vector<8x128xf32>
    %158 = vector.extract_strided_slice %154 {offsets = [0, 0], sizes = [8, 128], strides = [1, 1]} : vector<8x384xf32> to vector<8x128xf32>
    %159 = arith.addf %157, %158 : vector<8x128xf32>
    %160 = arith.negf %159 : vector<8x128xf32>
    %161 = math.exp %160 : vector<8x128xf32>
    %cst_39 = arith.constant 1.000000e+00 : f32
    %162 = vector.broadcast %cst_39 : f32 to vector<8x128xf32>
    %163 = arith.addf %162, %161 : vector<8x128xf32>
    %164 = arith.divf %162, %163 : vector<8x128xf32>
    %165 = vector.extract_strided_slice %156 {offsets = [0, 128], sizes = [8, 128], strides = [1, 1]} : vector<8x384xf32> to vector<8x128xf32>
    %166 = vector.extract_strided_slice %154 {offsets = [0, 128], sizes = [8, 128], strides = [1, 1]} : vector<8x384xf32> to vector<8x128xf32>
    %167 = arith.addf %165, %166 : vector<8x128xf32>
    %168 = arith.negf %167 : vector<8x128xf32>
    %169 = math.exp %168 : vector<8x128xf32>
    %cst_40 = arith.constant 1.000000e+00 : f32
    %170 = vector.broadcast %cst_40 : f32 to vector<8x128xf32>
    %171 = arith.addf %170, %169 : vector<8x128xf32>
    %172 = arith.divf %170, %171 : vector<8x128xf32>
    %173 = vector.extract_strided_slice %156 {offsets = [0, 256], sizes = [8, 128], strides = [1, 1]} : vector<8x384xf32> to vector<8x128xf32>
    %174 = vector.extract_strided_slice %154 {offsets = [0, 256], sizes = [8, 128], strides = [1, 1]} : vector<8x384xf32> to vector<8x128xf32>
    %175 = arith.mulf %164, %174 : vector<8x128xf32>
    %176 = arith.addf %173, %175 : vector<8x128xf32>
    %177 = math.tanh %176 : vector<8x128xf32>
    %cst_41 = arith.constant 1.000000e+00 : f32
    %178 = vector.broadcast %cst_41 : f32 to vector<8x128xf32>
    %179 = arith.subf %178, %172 : vector<8x128xf32>
    %180 = arith.mulf %179, %177 : vector<8x128xf32>
    %181 = arith.mulf %172, %148 : vector<8x128xf32>
    %182 = arith.addf %180, %181 : vector<8x128xf32>
    %c4 = arith.constant 4 : index
    %c0_42 = arith.constant 0 : index
    %c0_43 = arith.constant 0 : index
    %183 = vector.load %arg8[%c4, %c0_42, %c0_43] : memref<8x8x128xf32, #tpu.memory_space<vmem>>, vector<1x8x128xf32>
    %184 = vector.shape_cast %183 : vector<1x8x128xf32> to vector<8x128xf32>
    %185 = vector.shape_cast %182 : vector<8x128xf32> to vector<1x8x128xf32>
    tpu.vector_store %arg8[%c4, %c0_42, %c0_43], %185 {strides = array<i32>} : memref<8x8x128xf32, #tpu.memory_space<vmem>>, vector<1x8x128xf32>,
    %186 = arith.truncf %182 : vector<8x128xf32> to vector<8x128xbf16>
    %cst_44 = arith.constant dense<0.000000e+00> : vector<8x384xf32>
    %187 = tpu.matmul %186, %11, %cst_44 {dimension_numbers = #tpu.dot_dimension_numbers<[1], [0], [0], [1], [0, 0, 1, 1], [], []>} : vector<8x128xbf16>, vector<128x384xbf16>, vector<8x384xf32> -> vector<8x384xf32>
    %188 = arith.addf %187, %14 : vector<8x384xf32>
    %189 = vector.extract_strided_slice %10 {offsets = [5, 0, 0], sizes = [1, 8, 384], strides = [1, 1, 1]} : vector<8x8x384xf32> to vector<1x8x384xf32>
    %190 = vector.shape_cast %189 : vector<1x8x384xf32> to vector<8x384xf32>
    %191 = vector.extract_strided_slice %190 {offsets = [0, 0], sizes = [8, 128], strides = [1, 1]} : vector<8x384xf32> to vector<8x128xf32>
    %192 = vector.extract_strided_slice %188 {offsets = [0, 0], sizes = [8, 128], strides = [1, 1]} : vector<8x384xf32> to vector<8x128xf32>
    %193 = arith.addf %191, %192 : vector<8x128xf32>
    %194 = arith.negf %193 : vector<8x128xf32>
    %195 = math.exp %194 : vector<8x128xf32>
    %cst_45 = arith.constant 1.000000e+00 : f32
    %196 = vector.broadcast %cst_45 : f32 to vector<8x128xf32>
    %197 = arith.addf %196, %195 : vector<8x128xf32>
    %198 = arith.divf %196, %197 : vector<8x128xf32>
    %199 = vector.extract_strided_slice %190 {offsets = [0, 128], sizes = [8, 128], strides = [1, 1]} : vector<8x384xf32> to vector<8x128xf32>
    %200 = vector.extract_strided_slice %188 {offsets = [0, 128], sizes = [8, 128], strides = [1, 1]} : vector<8x384xf32> to vector<8x128xf32>
    %201 = arith.addf %199, %200 : vector<8x128xf32>
    %202 = arith.negf %201 : vector<8x128xf32>
    %203 = math.exp %202 : vector<8x128xf32>
    %cst_46 = arith.constant 1.000000e+00 : f32
    %204 = vector.broadcast %cst_46 : f32 to vector<8x128xf32>
    %205 = arith.addf %204, %203 : vector<8x128xf32>
    %206 = arith.divf %204, %205 : vector<8x128xf32>
    %207 = vector.extract_strided_slice %190 {offsets = [0, 256], sizes = [8, 128], strides = [1, 1]} : vector<8x384xf32> to vector<8x128xf32>
    %208 = vector.extract_strided_slice %188 {offsets = [0, 256], sizes = [8, 128], strides = [1, 1]} : vector<8x384xf32> to vector<8x128xf32>
    %209 = arith.mulf %198, %208 : vector<8x128xf32>
    %210 = arith.addf %207, %209 : vector<8x128xf32>
    %211 = math.tanh %210 : vector<8x128xf32>
    %cst_47 = arith.constant 1.000000e+00 : f32
    %212 = vector.broadcast %cst_47 : f32 to vector<8x128xf32>
    %213 = arith.subf %212, %206 : vector<8x128xf32>
    %214 = arith.mulf %213, %211 : vector<8x128xf32>
    %215 = arith.mulf %206, %182 : vector<8x128xf32>
    %216 = arith.addf %214, %215 : vector<8x128xf32>
    %c5 = arith.constant 5 : index
    %c0_48 = arith.constant 0 : index
    %c0_49 = arith.constant 0 : index
    %217 = vector.load %arg8[%c5, %c0_48, %c0_49] : memref<8x8x128xf32, #tpu.memory_space<vmem>>, vector<1x8x128xf32>
    %218 = vector.shape_cast %217 : vector<1x8x128xf32> to vector<8x128xf32>
    %219 = vector.shape_cast %216 : vector<8x128xf32> to vector<1x8x128xf32>
    tpu.vector_store %arg8[%c5, %c0_48, %c0_49], %219 {strides = array<i32>} : memref<8x8x128xf32, #tpu.memory_space<vmem>>, vector<1x8x128xf32>,
    %220 = arith.truncf %216 : vector<8x128xf32> to vector<8x128xbf16>
    %cst_50 = arith.constant dense<0.000000e+00> : vector<8x384xf32>
    %221 = tpu.matmul %220, %11, %cst_50 {dimension_numbers = #tpu.dot_dimension_numbers<[1], [0], [0], [1], [0, 0, 1, 1], [], []>} : vector<8x128xbf16>, vector<128x384xbf16>, vector<8x384xf32> -> vector<8x384xf32>
    %222 = arith.addf %221, %14 : vector<8x384xf32>
    %223 = vector.extract_strided_slice %10 {offsets = [6, 0, 0], sizes = [1, 8, 384], strides = [1, 1, 1]} : vector<8x8x384xf32> to vector<1x8x384xf32>
    %224 = vector.shape_cast %223 : vector<1x8x384xf32> to vector<8x384xf32>
    %225 = vector.extract_strided_slice %224 {offsets = [0, 0], sizes = [8, 128], strides = [1, 1]} : vector<8x384xf32> to vector<8x128xf32>
    %226 = vector.extract_strided_slice %222 {offsets = [0, 0], sizes = [8, 128], strides = [1, 1]} : vector<8x384xf32> to vector<8x128xf32>
    %227 = arith.addf %225, %226 : vector<8x128xf32>
    %228 = arith.negf %227 : vector<8x128xf32>
    %229 = math.exp %228 : vector<8x128xf32>
    %cst_51 = arith.constant 1.000000e+00 : f32
    %230 = vector.broadcast %cst_51 : f32 to vector<8x128xf32>
    %231 = arith.addf %230, %229 : vector<8x128xf32>
    %232 = arith.divf %230, %231 : vector<8x128xf32>
    %233 = vector.extract_strided_slice %224 {offsets = [0, 128], sizes = [8, 128], strides = [1, 1]} : vector<8x384xf32> to vector<8x128xf32>
    %234 = vector.extract_strided_slice %222 {offsets = [0, 128], sizes = [8, 128], strides = [1, 1]} : vector<8x384xf32> to vector<8x128xf32>
    %235 = arith.addf %233, %234 : vector<8x128xf32>
    %236 = arith.negf %235 : vector<8x128xf32>
    %237 = math.exp %236 : vector<8x128xf32>
    %cst_52 = arith.constant 1.000000e+00 : f32
    %238 = vector.broadcast %cst_52 : f32 to vector<8x128xf32>
    %239 = arith.addf %238, %237 : vector<8x128xf32>
    %240 = arith.divf %238, %239 : vector<8x128xf32>
    %241 = vector.extract_strided_slice %224 {offsets = [0, 256], sizes = [8, 128], strides = [1, 1]} : vector<8x384xf32> to vector<8x128xf32>
    %242 = vector.extract_strided_slice %222 {offsets = [0, 256], sizes = [8, 128], strides = [1, 1]} : vector<8x384xf32> to vector<8x128xf32>
    %243 = arith.mulf %232, %242 : vector<8x128xf32>
    %244 = arith.addf %241, %243 : vector<8x128xf32>
    %245 = math.tanh %244 : vector<8x128xf32>
    %cst_53 = arith.constant 1.000000e+00 : f32
    %246 = vector.broadcast %cst_53 : f32 to vector<8x128xf32>
    %247 = arith.subf %246, %240 : vector<8x128xf32>
    %248 = arith.mulf %247, %245 : vector<8x128xf32>
    %249 = arith.mulf %240, %216 : vector<8x128xf32>
    %250 = arith.addf %248, %249 : vector<8x128xf32>
    %c6 = arith.constant 6 : index
    %c0_54 = arith.constant 0 : index
    %c0_55 = arith.constant 0 : index
    %251 = vector.load %arg8[%c6, %c0_54, %c0_55] : memref<8x8x128xf32, #tpu.memory_space<vmem>>, vector<1x8x128xf32>
    %252 = vector.shape_cast %251 : vector<1x8x128xf32> to vector<8x128xf32>
    %253 = vector.shape_cast %250 : vector<8x128xf32> to vector<1x8x128xf32>
    tpu.vector_store %arg8[%c6, %c0_54, %c0_55], %253 {strides = array<i32>} : memref<8x8x128xf32, #tpu.memory_space<vmem>>, vector<1x8x128xf32>,
    %254 = arith.truncf %250 : vector<8x128xf32> to vector<8x128xbf16>
    %cst_56 = arith.constant dense<0.000000e+00> : vector<8x384xf32>
    %255 = tpu.matmul %254, %11, %cst_56 {dimension_numbers = #tpu.dot_dimension_numbers<[1], [0], [0], [1], [0, 0, 1, 1], [], []>} : vector<8x128xbf16>, vector<128x384xbf16>, vector<8x384xf32> -> vector<8x384xf32>
    %256 = arith.addf %255, %14 : vector<8x384xf32>
    %257 = vector.extract_strided_slice %10 {offsets = [7, 0, 0], sizes = [1, 8, 384], strides = [1, 1, 1]} : vector<8x8x384xf32> to vector<1x8x384xf32>
    %258 = vector.shape_cast %257 : vector<1x8x384xf32> to vector<8x384xf32>
    %259 = vector.extract_strided_slice %258 {offsets = [0, 0], sizes = [8, 128], strides = [1, 1]} : vector<8x384xf32> to vector<8x128xf32>
    %260 = vector.extract_strided_slice %256 {offsets = [0, 0], sizes = [8, 128], strides = [1, 1]} : vector<8x384xf32> to vector<8x128xf32>
    %261 = arith.addf %259, %260 : vector<8x128xf32>
    %262 = arith.negf %261 : vector<8x128xf32>
    %263 = math.exp %262 : vector<8x128xf32>
    %cst_57 = arith.constant 1.000000e+00 : f32
    %264 = vector.broadcast %cst_57 : f32 to vector<8x128xf32>
    %265 = arith.addf %264, %263 : vector<8x128xf32>
    %266 = arith.divf %264, %265 : vector<8x128xf32>
    %267 = vector.extract_strided_slice %258 {offsets = [0, 128], sizes = [8, 128], strides = [1, 1]} : vector<8x384xf32> to vector<8x128xf32>
    %268 = vector.extract_strided_slice %256 {offsets = [0, 128], sizes = [8, 128], strides = [1, 1]} : vector<8x384xf32> to vector<8x128xf32>
    %269 = arith.addf %267, %268 : vector<8x128xf32>
    %270 = arith.negf %269 : vector<8x128xf32>
    %271 = math.exp %270 : vector<8x128xf32>
    %cst_58 = arith.constant 1.000000e+00 : f32
    %272 = vector.broadcast %cst_58 : f32 to vector<8x128xf32>
    %273 = arith.addf %272, %271 : vector<8x128xf32>
    %274 = arith.divf %272, %273 : vector<8x128xf32>
    %275 = vector.extract_strided_slice %258 {offsets = [0, 256], sizes = [8, 128], strides = [1, 1]} : vector<8x384xf32> to vector<8x128xf32>
    %276 = vector.extract_strided_slice %256 {offsets = [0, 256], sizes = [8, 128], strides = [1, 1]} : vector<8x384xf32> to vector<8x128xf32>
    %277 = arith.mulf %266, %276 : vector<8x128xf32>
    %278 = arith.addf %275, %277 : vector<8x128xf32>
    %279 = math.tanh %278 : vector<8x128xf32>
    %cst_59 = arith.constant 1.000000e+00 : f32
    %280 = vector.broadcast %cst_59 : f32 to vector<8x128xf32>
    %281 = arith.subf %280, %274 : vector<8x128xf32>
    %282 = arith.mulf %281, %279 : vector<8x128xf32>
    %283 = arith.mulf %274, %250 : vector<8x128xf32>
    %284 = arith.addf %282, %283 : vector<8x128xf32>
    %c7 = arith.constant 7 : index
    %c0_60 = arith.constant 0 : index
    %c0_61 = arith.constant 0 : index
    %285 = vector.load %arg8[%c7, %c0_60, %c0_61] : memref<8x8x128xf32, #tpu.memory_space<vmem>>, vector<1x8x128xf32>
    %286 = vector.shape_cast %285 : vector<1x8x128xf32> to vector<8x128xf32>
    %287 = vector.shape_cast %284 : vector<8x128xf32> to vector<1x8x128xf32>
    tpu.vector_store %arg8[%c7, %c0_60, %c0_61], %287 {strides = array<i32>} : memref<8x8x128xf32, #tpu.memory_space<vmem>>, vector<1x8x128xf32>,
    %c0_62 = arith.constant 0 : index
    %c0_63 = arith.constant 0 : index
    %288 = vector.load %arg9[%c0_62, %c0_63] : memref<8x128xf32, #tpu.memory_space<vmem>>, vector<8x128xf32>
    tpu.vector_store %arg9[%c0_62, %c0_63], %284 {strides = array<i32>} : memref<8x128xf32, #tpu.memory_space<vmem>>, vector<8x128xf32>,
    return
  }
  func.func @transform_0(%arg0: i32, %arg1: i32) -> (i32, i32, i32) {
    %c0_i32 = arith.constant 0 : i32
    %c0_i32_0 = arith.constant 0 : i32
    return %arg1, %arg0, %c0_i32 : i32, i32, i32
  }
  func.func @transform_1(%arg0: i32, %arg1: i32) -> (i32, i32) {
    %c0_i32 = arith.constant 0 : i32
    %c0_i32_0 = arith.constant 0 : i32
    return %arg0, %c0_i32 : i32, i32
  }
  func.func @transform_2(%arg0: i32, %arg1: i32) -> (i32, i32) {
    %c0_i32 = arith.constant 0 : i32
    %c0_i32_0 = arith.constant 0 : i32
    %c0_i32_1 = arith.constant 0 : i32
    return %c0_i32, %c0_i32_0 : i32, i32
  }
  func.func @transform_3(%arg0: i32, %arg1: i32) -> (i32, i32) {
    %c0_i32 = arith.constant 0 : i32
    %c0_i32_0 = arith.constant 0 : i32
    %c0_i32_1 = arith.constant 0 : i32
    return %c0_i32, %c0_i32_0 : i32, i32
  }
  func.func @transform_4(%arg0: i32, %arg1: i32) -> (i32, i32) {
    %c0_i32 = arith.constant 0 : i32
    %c0_i32_0 = arith.constant 0 : i32
    %c0_i32_1 = arith.constant 0 : i32
    return %c0_i32, %c0_i32_0 : i32, i32
  }
  func.func @transform_5(%arg0: i32, %arg1: i32) -> (i32, i32) {
    %c0_i32 = arith.constant 0 : i32
    %c0_i32_0 = arith.constant 0 : i32
    %c0_i32_1 = arith.constant 0 : i32
    return %c0_i32, %c0_i32_0 : i32, i32
  }
  func.func @transform_6(%arg0: i32, %arg1: i32) -> (i32, i32, i32) {
    %c0_i32 = arith.constant 0 : i32
    %c0_i32_0 = arith.constant 0 : i32
    return %arg1, %arg0, %c0_i32 : i32, i32, i32
  }
}

</mosaic_0001>

<llo_original>
// kernel: encoder_rnn_forward.1
$region0: #{encoder_rnn_forward.1}
  #allocation0 [shape = 'u32[]', space=smem, size = 0x4, offset = 0x4, fixed_abs, tag = 'smem constant byte address 0x4 - core index']
  #allocation1 [shape = 'u32[144,128]{1,0:T(1,128)}', space=vmem, size = 0x12000, scoped, tag = 'internal scratch']
  #allocation2 [shape = 'f32[8,128]{1,0:T(8,128)}', space=vmem, size = 0x1000, scoped, tag = 'scratch operand']
  %s0 = inlined_call_operand.vmem [shape: bf16[8,8,128], index: 0, kind: input, shape index: {}]
  %s1 = inlined_call_operand.vmem [shape: f32[8,128], index: 1, kind: input, shape index: {}]
  %s2 = inlined_call_operand.vmem [shape: bf16[128,384], index: 2, kind: input, shape index: {}]
  %s3 = inlined_call_operand.vmem [shape: bf16[128,384], index: 3, kind: input, shape index: {}]
  %s4 = inlined_call_operand.vmem [shape: f32[1,384], index: 4, kind: input, shape index: {}]
  %s5 = inlined_call_operand.vmem [shape: f32[1,384], index: 5, kind: input, shape index: {}]
  %s6 = inlined_call_operand.vmem [shape: f32[8,8,128], index: 6, kind: output, shape index: {}]
  %s7 = sld [smem:[#allocation0]]
  $region38: #{encoder_rnn_forward.1} parent=0
    _
  %s9 = ssub.s32 1, %s7
  %s10 = scalar_select 0, %s9, %s7
  // Predicated region
  $region2: #{encoder_rnn_forward.1} parent=0 // pred_check
    _
  $region3: #{encoder_rnn_forward.1} parent=0 // pred_check_branch
    %12 = sbr.rel (0) target = $region5
  $region4: #{encoder_rnn_forward.1} parent=0 // pred_region
    _
  $region5: #{encoder_rnn_forward.1} parent=0 // pred_fallthru
    _
  // Predicated region
  $region6: #{encoder_rnn_forward.1} parent=0 // pred_check
    _
  $region7: #{encoder_rnn_forward.1} parent=0 // pred_check_branch
    %14 = sbr.rel (0) target = $region9
  $region8: #{encoder_rnn_forward.1} parent=0 // pred_region
    _
  $region9: #{encoder_rnn_forward.1} parent=0 // pred_fallthru
    _
  // Predicated region
  $region10: #{encoder_rnn_forward.1} parent=0 // pred_check
    _
  $region11: #{encoder_rnn_forward.1} parent=0 // pred_check_branch
    %16 = sbr.rel (0) target = $region13
  $region12: #{encoder_rnn_forward.1} parent=0 // pred_region
    _
  $region13: #{encoder_rnn_forward.1} parent=0 // pred_fallthru
    _
  // Predicated region
  $region14: #{encoder_rnn_forward.1} parent=0 // pred_check
    _
  $region15: #{encoder_rnn_forward.1} parent=0 // pred_check_branch
    %18 = sbr.rel (0) target = $region17
  $region16: #{encoder_rnn_forward.1} parent=0 // pred_region
    _
  $region17: #{encoder_rnn_forward.1} parent=0 // pred_fallthru
    _
  // Predicated region
  $region18: #{encoder_rnn_forward.1} parent=0 // pred_check
    _
  $region19: #{encoder_rnn_forward.1} parent=0 // pred_check_branch
    %20 = sbr.rel (0) target = $region21
  $region20: #{encoder_rnn_forward.1} parent=0 // pred_region
    _
  $region21: #{encoder_rnn_forward.1} parent=0 // pred_fallthru
    _
  // Predicated region
  $region22: #{encoder_rnn_forward.1} parent=0 // pred_check
    _
  $region23: #{encoder_rnn_forward.1} parent=0 // pred_check_branch
    %22 = sbr.rel (0) target = $region25
  $region24: #{encoder_rnn_forward.1} parent=0 // pred_region
    _
  $region25: #{encoder_rnn_forward.1} parent=0 // pred_fallthru
    _
  %p24 = scmp.eq.s32.totalorder 0, 0
  // Predicated region
  $region26: #{encoder_rnn_forward.1} parent=0 // pred_check
    %p25 = pneg %p24
  $region27: #{encoder_rnn_forward.1} parent=0 // pred_check_branch
    %27 = sbr.rel (%p25) target = $region29
  $region28: #{encoder_rnn_forward.1} parent=0 // pred_region
    %v28 = vld [vmem:[%s1] sm:$0xff]
    %29 = vst [vmem:[#allocation2] sm:$0xff] %v28
  $region29: #{encoder_rnn_forward.1} parent=0 // pred_fallthru
    _
  %v30 = vld [vmem:[%s0] sm:$0xf]
  %v31 = vld [vmem:[%s0 + $0x4] sm:$0xf]
  %v32 = vld [vmem:[%s0 + $0x8] sm:$0xf]
  %v33 = vld [vmem:[%s0 + $0xc] sm:$0xf]
  %v34 = vld [vmem:[%s0 + $0x10] sm:$0xf]
  %v35 = vld [vmem:[%s0 + $0x14] sm:$0xf]
  %v36 = vld [vmem:[%s0 + $0x18] sm:$0xf]
  %v37 = vld [vmem:[%s0 + $0x1c] sm:$0xf]
  %v38 = vld [vmem:[%s2] sm:$0xff]
  %v39 = vld [vmem:[%s2 + $0x8] sm:$0xf]
  %v40 = vld [vmem:[%s2 + $0xc] sm:$0xff]
  %v41 = vld [vmem:[%s2 + $0x14] sm:$0xf]
  %v42 = vld [vmem:[%s2 + $0x18] sm:$0xff]
  %v43 = vld [vmem:[%s2 + $0x20] sm:$0xf]
  %v44 = vld [vmem:[%s2 + $0x24] sm:$0xff]
  %v45 = vld [vmem:[%s2 + $0x2c] sm:$0xf]
  %v46 = vld [vmem:[%s2 + $0x30] sm:$0xff]
  %v47 = vld [vmem:[%s2 + $0x38] sm:$0xf]
  %v48 = vld [vmem:[%s2 + $0x3c] sm:$0xff]
  %v49 = vld [vmem:[%s2 + $0x44] sm:$0xf]
  %v50 = vld [vmem:[%s2 + $0x48] sm:$0xff]
  %v51 = vld [vmem:[%s2 + $0x50] sm:$0xf]
  %v52 = vld [vmem:[%s2 + $0x54] sm:$0xff]
  %v53 = vld [vmem:[%s2 + $0x5c] sm:$0xf]
  %v54 = vld [vmem:[%s2 + $0x60] sm:$0xff]
  %v55 = vld [vmem:[%s2 + $0x68] sm:$0xf]
  %v56 = vld [vmem:[%s2 + $0x6c] sm:$0xff]
  %v57 = vld [vmem:[%s2 + $0x74] sm:$0xf]
  %v58 = vld [vmem:[%s2 + $0x78] sm:$0xff]
  %v59 = vld [vmem:[%s2 + $0x80] sm:$0xf]
  %v60 = vld [vmem:[%s2 + $0x84] sm:$0xff]
  %v61 = vld [vmem:[%s2 + $0x8c] sm:$0xf]
  %v62 = vld [vmem:[%s2 + $0x90] sm:$0xff]
  %v63 = vld [vmem:[%s2 + $0x98] sm:$0xf]
  %v64 = vld [vmem:[%s2 + $0x9c] sm:$0xff]
  %v65 = vld [vmem:[%s2 + $0xa4] sm:$0xf]
  %v66 = vld [vmem:[%s2 + $0xa8] sm:$0xff]
  %v67 = vld [vmem:[%s2 + $0xb0] sm:$0xf]
  %v68 = vld [vmem:[%s2 + $0xb4] sm:$0xff]
  %v69 = vld [vmem:[%s2 + $0xbc] sm:$0xf]
  %v70 = vld [vmem:[%s4] sm:$0x7]
  %v72 = vlaneseq
  %v73 = vshrl.u32 %v72, 7
  %v74 = vsub.s32 0, %v73
  %v75 = vrot.slane %v70, %v74
  %v76 = vlaneseq
  %v77 = vshrl.u32 %v76, 7
  %v78 = vsub.s32 1, %v77
  %v79 = vrot.slane %v70, %v78
  %v80 = vlaneseq
  %v81 = vshrl.u32 %v80, 7
  %v82 = vsub.s32 2, %v81
  %v83 = vrot.slane %v70, %v82
  %v95 = vunpack.c.l.b16 %v30
  %v96 = vunpack.c.l.b16 %v31
  %v97 = vunpack.c.l.b16 %v32
  %v98 = vunpack.c.l.b16 %v33
  %v99 = vunpack.c.l.b16 %v34
  %v100 = vunpack.c.l.b16 %v35
  %v101 = vunpack.c.l.b16 %v36
  %v102 = vunpack.c.l.b16 %v37
  %v103 = vpack.c.b16 %v96, %v95
  %v104 = vpack.c.b16 %v98, %v97
  %v105 = vpack.c.b16 %v100, %v99
  %v106 = vpack.c.b16 %v102, %v101
  %v143 = vunpack.c.l.b16 %v38
  %v144 = vunpack.c.h.b16 %v38
  %v145 = vunpack.c.l.b16 %v39
  %v146 = vunpack.c.l.b16 %v40
  %v147 = vunpack.c.h.b16 %v40
  %v148 = vunpack.c.l.b16 %v41
  %v149 = vunpack.c.l.b16 %v42
  %v150 = vunpack.c.h.b16 %v42
  %v151 = vunpack.c.l.b16 %v43
  %v152 = vunpack.c.l.b16 %v44
  %v153 = vunpack.c.h.b16 %v44
  %v154 = vunpack.c.l.b16 %v45
  %v155 = vunpack.c.l.b16 %v46
  %v156 = vunpack.c.h.b16 %v46
  %v157 = vunpack.c.l.b16 %v47
  %v158 = vunpack.c.l.b16 %v48
  %v159 = vunpack.c.h.b16 %v48
  %v160 = vunpack.c.l.b16 %v49
  %v161 = vunpack.c.l.b16 %v50
  %v162 = vunpack.c.h.b16 %v50
  %v163 = vunpack.c.l.b16 %v51
  %v164 = vunpack.c.l.b16 %v52
  %v165 = vunpack.c.h.b16 %v52
  %v166 = vunpack.c.l.b16 %v53
  %v167 = vunpack.c.l.b16 %v54
  %v168 = vunpack.c.h.b16 %v54
  %v169 = vunpack.c.l.b16 %v55
  %v170 = vunpack.c.l.b16 %v56
  %v171 = vunpack.c.h.b16 %v56
  %v172 = vunpack.c.l.b16 %v57
  %v173 = vunpack.c.l.b16 %v58
  %v174 = vunpack.c.h.b16 %v58
  %v175 = vunpack.c.l.b16 %v59
  %v176 = vunpack.c.l.b16 %v60
  %v177 = vunpack.c.h.b16 %v60
  %v178 = vunpack.c.l.b16 %v61
  %v179 = vunpack.c.l.b16 %v62
  %v180 = vunpack.c.h.b16 %v62
  %v181 = vunpack.c.l.b16 %v63
  %v182 = vunpack.c.l.b16 %v64
  %v183 = vunpack.c.h.b16 %v64
  %v184 = vunpack.c.l.b16 %v65
  %v185 = vunpack.c.l.b16 %v66
  %v186 = vunpack.c.h.b16 %v66
  %v187 = vunpack.c.l.b16 %v67
  %v188 = vunpack.c.l.b16 %v68
  %v189 = vunpack.c.h.b16 %v68
  %v190 = vunpack.c.l.b16 %v69
  %v191 = vpack.c.b16 %v146, %v143
  %v192 = vpack.c.b16 %v147, %v144
  %v193 = vpack.c.b16 %v148, %v145
  %v194 = vpack.c.b16 %v152, %v149
  %v195 = vpack.c.b16 %v153, %v150
  %v196 = vpack.c.b16 %v154, %v151
  %v197 = vpack.c.b16 %v158, %v155
  %v198 = vpack.c.b16 %v159, %v156
  %v199 = vpack.c.b16 %v160, %v157
  %v200 = vpack.c.b16 %v164, %v161
  %v201 = vpack.c.b16 %v165, %v162
  %v202 = vpack.c.b16 %v166, %v163
  %v203 = vpack.c.b16 %v170, %v167
  %v204 = vpack.c.b16 %v171, %v168
  %v205 = vpack.c.b16 %v172, %v169
  %v206 = vpack.c.b16 %v176, %v173
  %v207 = vpack.c.b16 %v177, %v174
  %v208 = vpack.c.b16 %v178, %v175
  %v209 = vpack.c.b16 %v182, %v179
  %v210 = vpack.c.b16 %v183, %v180
  %v211 = vpack.c.b16 %v184, %v181
  %v212 = vpack.c.b16 %v188, %v185
  %v213 = vpack.c.b16 %v189, %v186
  %v214 = vpack.c.b16 %v190, %v187
  %239 = vmatprep.subr.bf16.mxu0 %v213
  %240 = vmatpush1.bf16.msra.mxu0 %v212
  %241 = vmatprep.subr.bf16.mxu0 %v210
  %242 = vmatpush1.bf16.msra.mxu0 %v209
  %243 = vmatprep.subr.bf16.mxu0 %v207
  %244 = vmatpush1.bf16.msra.mxu0 %v206
  %245 = vmatprep.subr.bf16.mxu0 %v204
  %246 = vmatpush1.bf16.msra.mxu0 %v203
  %247 = vmatprep.subr.bf16.mxu0 %v201
  %248 = vmatpush1.bf16.msra.mxu0 %v200
  %249 = vmatprep.subr.bf16.mxu0 %v198
  %250 = vmatpush1.bf16.msra.mxu0 %v197
  %251 = vmatprep.subr.bf16.mxu0 %v195
  %252 = vmatpush1.bf16.msra.mxu0 %v194
  %253 = vmatprep.subr.bf16.mxu0 %v192
  %254 = vmatpush1.bf16.msra.mxu0 %v191
  %255 = vmatprep.subr.bf16.mxu0 0
  %256 = vmatpush2.bf16.msra.mxu0 0
  %257 = vmatprep.subr.bf16.mxu0 0
  %258 = vmatpush2.bf16.msra.mxu0 0
  %259 = vmatprep.subr.bf16.mxu0 0
  %260 = vmatpush2.bf16.msra.mxu0 0
  %261 = vmatprep.subr.bf16.mxu0 0
  %262 = vmatpush2.bf16.msra.mxu0 0
  %263 = vmatprep.subr.bf16.mxu0 0
  %264 = vmatpush2.bf16.msra.mxu0 0
  %265 = vmatprep.subr.bf16.mxu0 0
  %266 = vmatpush2.bf16.msra.mxu0 0
  %267 = vmatprep.subr.bf16.mxu0 0
  %268 = vmatpush2.bf16.msra.mxu0 0
  %269 = vmatprep.subr.bf16.mxu0 0
  %270 = vmatpush2.bf16.msra.mxu0 0
  %271 = vmatprep.mubr.bf16.mxu0 0
  %272 = vmatmul.mubr.bf16.gmra.mxu0 %v103
  %v273 = vpop.f32.mrf.mxu0
  %v274 = vadd.f32 %v75, %v273
  %v275 = vpop.f32.mrf.mxu0
  %v276 = vadd.f32 %v79, %v275
  %v277 = vpop.f32.mrf.mxu0
  %v278 = vadd.f32 %v75, %v277
  %v279 = vpop.f32.mrf.mxu0
  %v280 = vadd.f32 %v79, %v279
  %281 = vmatprep.mubr.bf16.mxu0 0
  %282 = vmatmul.mubr.bf16.gmra.mxu0 %v104
  %v283 = vpop.f32.mrf.mxu0
  %v284 = vadd.f32 %v75, %v283
  %v285 = vpop.f32.mrf.mxu0
  %v286 = vadd.f32 %v79, %v285
  %v287 = vpop.f32.mrf.mxu0
  %v288 = vadd.f32 %v75, %v287
  %v289 = vpop.f32.mrf.mxu0
  %v290 = vadd.f32 %v79, %v289
  %291 = vmatprep.mubr.bf16.mxu0 0
  %292 = vmatmul.mubr.bf16.gmra.mxu0 %v105
  %v293 = vpop.f32.mrf.mxu0
  %v294 = vadd.f32 %v75, %v293
  %v295 = vpop.f32.mrf.mxu0
  %v296 = vadd.f32 %v79, %v295
  %v297 = vpop.f32.mrf.mxu0
  %v298 = vadd.f32 %v75, %v297
  %v299 = vpop.f32.mrf.mxu0
  %v300 = vadd.f32 %v79, %v299
  %301 = vmatprep.mubr.bf16.mxu0 0
  %302 = vmatmul.mubr.bf16.gmra.mxu0 %v106
  %v303 = vpop.f32.mrf.mxu0
  %v304 = vadd.f32 %v75, %v303
  %v305 = vpop.f32.mrf.mxu0
  %v306 = vadd.f32 %v79, %v305
  %v307 = vpop.f32.mrf.mxu0
  %v308 = vadd.f32 %v75, %v307
  %v309 = vpop.f32.mrf.mxu0
  %v310 = vadd.f32 %v79, %v309
  %311 = vdwg.mxu0
  %312 = vmatprep.subr.bf16.mxu0 0
  %313 = vmatpush1.bf16.msra.mxu0 %v214
  %314 = vmatprep.subr.bf16.mxu0 0
  %315 = vmatpush1.bf16.msra.mxu0 %v211
  %316 = vmatprep.subr.bf16.mxu0 0
  %317 = vmatpush1.bf16.msra.mxu0 %v208
  %318 = vmatprep.subr.bf16.mxu0 0
  %319 = vmatpush1.bf16.msra.mxu0 %v205
  %320 = vmatprep.subr.bf16.mxu0 0
  %321 = vmatpush1.bf16.msra.mxu0 %v202
  %322 = vmatprep.subr.bf16.mxu0 0
  %323 = vmatpush1.bf16.msra.mxu0 %v199
  %324 = vmatprep.subr.bf16.mxu0 0
  %325 = vmatpush1.bf16.msra.mxu0 %v196
  %326 = vmatprep.subr.bf16.mxu0 0
  %327 = vmatpush1.bf16.msra.mxu0 %v193
  %328 = vmatprep.subr.bf16.mxu0 0
  %329 = vmatpush2.bf16.msra.mxu0 0
  %330 = vmatprep.subr.bf16.mxu0 0
  %331 = vmatpush2.bf16.msra.mxu0 0
  %332 = vmatprep.subr.bf16.mxu0 0
  %333 = vmatpush2.bf16.msra.mxu0 0
  %334 = vmatprep.subr.bf16.mxu0 0
  %335 = vmatpush2.bf16.msra.mxu0 0
  %336 = vmatprep.subr.bf16.mxu0 0
  %337 = vmatpush2.bf16.msra.mxu0 0
  %338 = vmatprep.subr.bf16.mxu0 0
  %339 = vmatpush2.bf16.msra.mxu0 0
  %340 = vmatprep.subr.bf16.mxu0 0
  %341 = vmatpush2.bf16.msra.mxu0 0
  %342 = vmatprep.subr.bf16.mxu0 0
  %343 = vmatpush2.bf16.msra.mxu0 0
  %344 = vmatprep.mubr.bf16.mxu0 0
  %345 = vmatmul.mubr.bf16.gmra.mxu0 %v103
  %v346 = vpop.f32.mrf.mxu0
  %v347 = vadd.f32 %v83, %v346
  %v348 = vpop.f32.mrf.mxu0
  %v349 = vpop.f32.mrf.mxu0
  %v350 = vadd.f32 %v83, %v349
  %v351 = vpop.f32.mrf.mxu0
  %352 = vmatprep.mubr.bf16.mxu0 0
  %353 = vmatmul.mubr.bf16.gmra.mxu0 %v104
  %v354 = vpop.f32.mrf.mxu0
  %v355 = vadd.f32 %v83, %v354
  %v356 = vpop.f32.mrf.mxu0
  %v357 = vpop.f32.mrf.mxu0
  %v358 = vadd.f32 %v83, %v357
  %v359 = vpop.f32.mrf.mxu0
  %360 = vmatprep.mubr.bf16.mxu0 0
  %361 = vmatmul.mubr.bf16.gmra.mxu0 %v105
  %v362 = vpop.f32.mrf.mxu0
  %v363 = vadd.f32 %v83, %v362
  %v364 = vpop.f32.mrf.mxu0
  %v365 = vpop.f32.mrf.mxu0
  %v366 = vadd.f32 %v83, %v365
  %v367 = vpop.f32.mrf.mxu0
  %368 = vmatprep.mubr.bf16.mxu0 0
  %369 = vmatmul.mubr.bf16.gmra.mxu0 %v106
  %v370 = vpop.f32.mrf.mxu0
  %v371 = vadd.f32 %v83, %v370
  %v372 = vpop.f32.mrf.mxu0
  %v373 = vpop.f32.mrf.mxu0
  %v374 = vadd.f32 %v83, %v373
  %v375 = vpop.f32.mrf.mxu0
  %376 = vdwg.mxu0
  %v377 = vld [vmem:[%s3] sm:$0xff]
  %v378 = vld [vmem:[%s3 + $0x8] sm:$0xf]
  %v379 = vld [vmem:[%s3 + $0xc] sm:$0xff]
  %v380 = vld [vmem:[%s3 + $0x14] sm:$0xf]
  %v381 = vld [vmem:[%s3 + $0x18] sm:$0xff]
  %v382 = vld [vmem:[%s3 + $0x20] sm:$0xf]
  %v383 = vld [vmem:[%s3 + $0x24] sm:$0xff]
  %v384 = vld [vmem:[%s3 + $0x2c] sm:$0xf]
  %v385 = vld [vmem:[%s3 + $0x30] sm:$0xff]
  %v386 = vld [vmem:[%s3 + $0x38] sm:$0xf]
  %v387 = vld [vmem:[%s3 + $0x3c] sm:$0xff]
  %v388 = vld [vmem:[%s3 + $0x44] sm:$0xf]
  %v389 = vld [vmem:[%s3 + $0x48] sm:$0xff]
  %v390 = vld [vmem:[%s3 + $0x50] sm:$0xf]
  %v391 = vld [vmem:[%s3 + $0x54] sm:$0xff]
  %v392 = vld [vmem:[%s3 + $0x5c] sm:$0xf]
  %v393 = vld [vmem:[%s3 + $0x60] sm:$0xff]
  %v394 = vld [vmem:[%s3 + $0x68] sm:$0xf]
  %v395 = vld [vmem:[%s3 + $0x6c] sm:$0xff]
  %v396 = vld [vmem:[%s3 + $0x74] sm:$0xf]
  %v397 = vld [vmem:[%s3 + $0x78] sm:$0xff]
  %v398 = vld [vmem:[%s3 + $0x80] sm:$0xf]
  %v399 = vld [vmem:[%s3 + $0x84] sm:$0xff]
  %v400 = vld [vmem:[%s3 + $0x8c] sm:$0xf]
  %v401 = vld [vmem:[%s3 + $0x90] sm:$0xff]
  %v402 = vld [vmem:[%s3 + $0x98] sm:$0xf]
  %v403 = vld [vmem:[%s3 + $0x9c] sm:$0xff]
  %v404 = vld [vmem:[%s3 + $0xa4] sm:$0xf]
  %v405 = vld [vmem:[%s3 + $0xa8] sm:$0xff]
  %v406 = vld [vmem:[%s3 + $0xb0] sm:$0xf]
  %v407 = vld [vmem:[%s3 + $0xb4] sm:$0xff]
  %v408 = vld [vmem:[%s3 + $0xbc] sm:$0xf]
  %v409 = vld [vmem:[%s5] sm:$0x7]
  %v411 = vlaneseq
  %v412 = vshrl.u32 %v411, 7
  %v413 = vsub.s32 0, %v412
  %v414 = vrot.slane %v409, %v413
  %v415 = vlaneseq
  %v416 = vshrl.u32 %v415, 7
  %v417 = vsub.s32 1, %v416
  %v418 = vrot.slane %v409, %v417
  %v419 = vlaneseq
  %v420 = vshrl.u32 %v419, 7
  %v421 = vsub.s32 2, %v420
  %v422 = vrot.slane %v409, %v421
  %v426 = vld [vmem:[#allocation2] sm:$0xff]
  %v427 = vpack.c.bf16 %v426, %v426
  %v460 = vunpack.c.l.b16 %v377
  %v461 = vunpack.c.h.b16 %v377
  %v462 = vunpack.c.l.b16 %v378
  %v463 = vunpack.c.l.b16 %v379
  %v464 = vunpack.c.h.b16 %v379
  %v465 = vunpack.c.l.b16 %v380
  %v466 = vunpack.c.l.b16 %v381
  %v467 = vunpack.c.h.b16 %v381
  %v468 = vunpack.c.l.b16 %v382
  %v469 = vunpack.c.l.b16 %v383
  %v470 = vunpack.c.h.b16 %v383
  %v471 = vunpack.c.l.b16 %v384
  %v472 = vunpack.c.l.b16 %v385
  %v473 = vunpack.c.h.b16 %v385
  %v474 = vunpack.c.l.b16 %v386
  %v475 = vunpack.c.l.b16 %v387
  %v476 = vunpack.c.h.b16 %v387
  %v477 = vunpack.c.l.b16 %v388
  %v478 = vunpack.c.l.b16 %v389
  %v479 = vunpack.c.h.b16 %v389
  %v480 = vunpack.c.l.b16 %v390
  %v481 = vunpack.c.l.b16 %v391
  %v482 = vunpack.c.h.b16 %v391
  %v483 = vunpack.c.l.b16 %v392
  %v484 = vunpack.c.l.b16 %v393
  %v485 = vunpack.c.h.b16 %v393
  %v486 = vunpack.c.l.b16 %v394
  %v487 = vunpack.c.l.b16 %v395
  %v488 = vunpack.c.h.b16 %v395
  %v489 = vunpack.c.l.b16 %v396
  %v490 = vunpack.c.l.b16 %v397
  %v491 = vunpack.c.h.b16 %v397
  %v492 = vunpack.c.l.b16 %v398
  %v493 = vunpack.c.l.b16 %v399
  %v494 = vunpack.c.h.b16 %v399
  %v495 = vunpack.c.l.b16 %v400
  %v496 = vunpack.c.l.b16 %v401
  %v497 = vunpack.c.h.b16 %v401
  %v498 = vunpack.c.l.b16 %v402
  %v499 = vunpack.c.l.b16 %v403
  %v500 = vunpack.c.h.b16 %v403
  %v501 = vunpack.c.l.b16 %v404
  %v502 = vunpack.c.l.b16 %v405
  %v503 = vunpack.c.h.b16 %v405
  %v504 = vunpack.c.l.b16 %v406
  %v505 = vunpack.c.l.b16 %v407
  %v506 = vunpack.c.h.b16 %v407
  %v507 = vunpack.c.l.b16 %v408
  %v508 = vpack.c.b16 %v463, %v460
  %v509 = vpack.c.b16 %v464, %v461
  %v510 = vpack.c.b16 %v465, %v462
  %v511 = vpack.c.b16 %v469, %v466
  %v512 = vpack.c.b16 %v470, %v467
  %v513 = vpack.c.b16 %v471, %v468
  %v514 = vpack.c.b16 %v475, %v472
  %v515 = vpack.c.b16 %v476, %v473
  %v516 = vpack.c.b16 %v477, %v474
  %v517 = vpack.c.b16 %v481, %v478
  %v518 = vpack.c.b16 %v482, %v479
  %v519 = vpack.c.b16 %v483, %v480
  %v520 = vpack.c.b16 %v487, %v484
  %v521 = vpack.c.b16 %v488, %v485
  %v522 = vpack.c.b16 %v489, %v486
  %v523 = vpack.c.b16 %v493, %v490
  %v524 = vpack.c.b16 %v494, %v491
  %v525 = vpack.c.b16 %v495, %v492
  %v526 = vpack.c.b16 %v499, %v496
  %v527 = vpack.c.b16 %v500, %v497
  %v528 = vpack.c.b16 %v501, %v498
  %v529 = vpack.c.b16 %v505, %v502
  %v530 = vpack.c.b16 %v506, %v503
  %v531 = vpack.c.b16 %v507, %v504
  %556 = vmatprep.subr.bf16.mxu0 %v530
  %557 = vmatpush1.bf16.msra.mxu0 %v529
  %558 = vmatprep.subr.bf16.mxu0 %v527
  %559 = vmatpush1.bf16.msra.mxu0 %v526
  %560 = vmatprep.subr.bf16.mxu0 %v524
  %561 = vmatpush1.bf16.msra.mxu0 %v523
  %562 = vmatprep.subr.bf16.mxu0 %v521
  %563 = vmatpush1.bf16.msra.mxu0 %v520
  %564 = vmatprep.subr.bf16.mxu0 %v518
  %565 = vmatpush1.bf16.msra.mxu0 %v517
  %566 = vmatprep.subr.bf16.mxu0 %v515
  %567 = vmatpush1.bf16.msra.mxu0 %v514
  %568 = vmatprep.subr.bf16.mxu0 %v512
  %569 = vmatpush1.bf16.msra.mxu0 %v511
  %570 = vmatprep.subr.bf16.mxu0 %v509
  %571 = vmatpush1.bf16.msra.mxu0 %v508
  %572 = vmatprep.subr.bf16.mxu0 0
  %573 = vmatpush2.bf16.msra.mxu0 0
  %574 = vmatprep.subr.bf16.mxu0 0
  %575 = vmatpush2.bf16.msra.mxu0 0
  %576 = vmatprep.subr.bf16.mxu0 0
  %577 = vmatpush2.bf16.msra.mxu0 0
  %578 = vmatprep.subr.bf16.mxu0 0
  %579 = vmatpush2.bf16.msra.mxu0 0
  %580 = vmatprep.subr.bf16.mxu0 0
  %581 = vmatpush2.bf16.msra.mxu0 0
  %582 = vmatprep.subr.bf16.mxu0 0
  %583 = vmatpush2.bf16.msra.mxu0 0
  %584 = vmatprep.subr.bf16.mxu0 0
  %585 = vmatpush2.bf16.msra.mxu0 0
  %586 = vmatprep.subr.bf16.mxu0 0
  %587 = vmatpush2.bf16.msra.mxu0 0
  %588 = vmatprep.mubr.bf16.mxu0 0
  %589 = vmatmul.mubr.bf16.gmra.mxu0 %v427
  %v590 = vpop.f32.mrf.mxu0
  %v591 = vadd.f32 %v414, %v590
  %v592 = vpop.f32.mrf.mxu0
  %v593 = vadd.f32 %v418, %v592
  %v594 = vpop.f32.mrf.mxu0
  %v595 = vpop.f32.mrf.mxu0
  %596 = vdwg.mxu0
  %597 = vmatprep.subr.bf16.mxu0 0
  %598 = vmatpush1.bf16.msra.mxu0 %v531
  %599 = vmatprep.subr.bf16.mxu0 0
  %600 = vmatpush1.bf16.msra.mxu0 %v528
  %601 = vmatprep.subr.bf16.mxu0 0
  %602 = vmatpush1.bf16.msra.mxu0 %v525
  %603 = vmatprep.subr.bf16.mxu0 0
  %604 = vmatpush1.bf16.msra.mxu0 %v522
  %605 = vmatprep.subr.bf16.mxu0 0
  %606 = vmatpush1.bf16.msra.mxu0 %v519
  %607 = vmatprep.subr.bf16.mxu0 0
  %608 = vmatpush1.bf16.msra.mxu0 %v516
  %609 = vmatprep.subr.bf16.mxu0 0
  %610 = vmatpush1.bf16.msra.mxu0 %v513
  %611 = vmatprep.subr.bf16.mxu0 0
  %612 = vmatpush1.bf16.msra.mxu0 %v510
  %613 = vmatprep.subr.bf16.mxu0 0
  %614 = vmatpush2.bf16.msra.mxu0 0
  %615 = vmatprep.subr.bf16.mxu0 0
  %616 = vmatpush2.bf16.msra.mxu0 0
  %617 = vmatprep.subr.bf16.mxu0 0
  %618 = vmatpush2.bf16.msra.mxu0 0
  %619 = vmatprep.subr.bf16.mxu0 0
  %620 = vmatpush2.bf16.msra.mxu0 0
  %621 = vmatprep.subr.bf16.mxu0 0
  %622 = vmatpush2.bf16.msra.mxu0 0
  %623 = vmatprep.subr.bf16.mxu0 0
  %624 = vmatpush2.bf16.msra.mxu0 0
  %625 = vmatprep.subr.bf16.mxu0 0
  %626 = vmatpush2.bf16.msra.mxu0 0
  %627 = vmatprep.subr.bf16.mxu0 0
  %628 = vmatpush2.bf16.msra.mxu0 0
  %629 = vmatprep.mubr.bf16.mxu0 0
  %630 = vmatmul.mubr.bf16.gmra.mxu0 %v427
  %v631 = vpop.f32.mrf.mxu0
  %v632 = vadd.f32 %v422, %v631
  %v633 = vpop.f32.mrf.mxu0
  %v634 = vpop.f32.mrf.mxu0
  %v635 = vpop.f32.mrf.mxu0
  %636 = vdwg.mxu0
  %v637 = vadd.f32 %v274, %v591
  %v638 = vxor.u32 %v637, 2147483648
  %v639 = vmul.f32 %v638, 1.442695
  %v640 = vpow.pop %v639
  %v641 = vadd.f32 %v640, 1.0
  %v642 = vrcp.pop %v641
  %v643 = vmul.f32 1.0, %v642
  %v644 = vadd.f32 %v276, %v593
  %v645 = vxor.u32 %v644, 2147483648
  %v646 = vmul.f32 %v645, 1.442695
  %v647 = vpow.pop %v646
  %v648 = vadd.f32 %v647, 1.0
  %v649 = vrcp.pop %v648
  %v650 = vmul.f32 1.0, %v649
  %v651 = vmul.f32 %v643, %v632
  %v652 = vadd.f32 %v347, %v651
  %v653 = vtanh.pop %v652
  %v654 = vsub.f32 1.0, %v650
  %v655 = vmul.f32 %v654, %v653
  %v656 = vmul.f32 %v650, %v426
  %v657 = vadd.f32 %v655, %v656
  %658 = vst [vmem:[%s6] sm:$0xff] %v657
  %v659 = vpack.c.bf16 %v657, %v657
  %660 = vmatprep.subr.bf16.mxu0 %v530
  %661 = vmatpush1.bf16.msra.mxu0 %v529
  %662 = vmatprep.subr.bf16.mxu0 %v527
  %663 = vmatpush1.bf16.msra.mxu0 %v526
  %664 = vmatprep.subr.bf16.mxu0 %v524
  %665 = vmatpush1.bf16.msra.mxu0 %v523
  %666 = vmatprep.subr.bf16.mxu0 %v521
  %667 = vmatpush1.bf16.msra.mxu0 %v520
  %668 = vmatprep.subr.bf16.mxu0 %v518
  %669 = vmatpush1.bf16.msra.mxu0 %v517
  %670 = vmatprep.subr.bf16.mxu0 %v515
  %671 = vmatpush1.bf16.msra.mxu0 %v514
  %672 = vmatprep.subr.bf16.mxu0 %v512
  %673 = vmatpush1.bf16.msra.mxu0 %v511
  %674 = vmatprep.subr.bf16.mxu0 %v509
  %675 = vmatpush1.bf16.msra.mxu0 %v508
  %676 = vmatprep.subr.bf16.mxu0 0
  %677 = vmatpush2.bf16.msra.mxu0 0
  %678 = vmatprep.subr.bf16.mxu0 0
  %679 = vmatpush2.bf16.msra.mxu0 0
  %680 = vmatprep.subr.bf16.mxu0 0
  %681 = vmatpush2.bf16.msra.mxu0 0
  %682 = vmatprep.subr.bf16.mxu0 0
  %683 = vmatpush2.bf16.msra.mxu0 0
  %684 = vmatprep.subr.bf16.mxu0 0
  %685 = vmatpush2.bf16.msra.mxu0 0
  %686 = vmatprep.subr.bf16.mxu0 0
  %687 = vmatpush2.bf16.msra.mxu0 0
  %688 = vmatprep.subr.bf16.mxu0 0
  %689 = vmatpush2.bf16.msra.mxu0 0
  %690 = vmatprep.subr.bf16.mxu0 0
  %691 = vmatpush2.bf16.msra.mxu0 0
  %692 = vmatprep.mubr.bf16.mxu0 0
  %693 = vmatmul.mubr.bf16.gmra.mxu0 %v659
  %v694 = vpop.f32.mrf.mxu0
  %v695 = vadd.f32 %v414, %v694
  %v696 = vpop.f32.mrf.mxu0
  %v697 = vadd.f32 %v418, %v696
  %v698 = vpop.f32.mrf.mxu0
  %v699 = vpop.f32.mrf.mxu0
  %700 = vdwg.mxu0
  %701 = vmatprep.subr.bf16.mxu0 0
  %702 = vmatpush1.bf16.msra.mxu0 %v531
  %703 = vmatprep.subr.bf16.mxu0 0
  %704 = vmatpush1.bf16.msra.mxu0 %v528
  %705 = vmatprep.subr.bf16.mxu0 0
  %706 = vmatpush1.bf16.msra.mxu0 %v525
  %707 = vmatprep.subr.bf16.mxu0 0
  %708 = vmatpush1.bf16.msra.mxu0 %v522
  %709 = vmatprep.subr.bf16.mxu0 0
  %710 = vmatpush1.bf16.msra.mxu0 %v519
  %711 = vmatprep.subr.bf16.mxu0 0
  %712 = vmatpush1.bf16.msra.mxu0 %v516
  %713 = vmatprep.subr.bf16.mxu0 0
  %714 = vmatpush1.bf16.msra.mxu0 %v513
  %715 = vmatprep.subr.bf16.mxu0 0
  %716 = vmatpush1.bf16.msra.mxu0 %v510
  %717 = vmatprep.subr.bf16.mxu0 0
  %718 = vmatpush2.bf16.msra.mxu0 0
  %719 = vmatprep.subr.bf16.mxu0 0
  %720 = vmatpush2.bf16.msra.mxu0 0
  %721 = vmatprep.subr.bf16.mxu0 0
  %722 = vmatpush2.bf16.msra.mxu0 0
  %723 = vmatprep.subr.bf16.mxu0 0
  %724 = vmatpush2.bf16.msra.mxu0 0
  %725 = vmatprep.subr.bf16.mxu0 0
  %726 = vmatpush2.bf16.msra.mxu0 0
  %727 = vmatprep.subr.bf16.mxu0 0
  %728 = vmatpush2.bf16.msra.mxu0 0
  %729 = vmatprep.subr.bf16.mxu0 0
  %730 = vmatpush2.bf16.msra.mxu0 0
  %731 = vmatprep.subr.bf16.mxu0 0
  %732 = vmatpush2.bf16.msra.mxu0 0
  %733 = vmatprep.mubr.bf16.mxu0 0
  %734 = vmatmul.mubr.bf16.gmra.mxu0 %v659
  %v735 = vpop.f32.mrf.mxu0
  %v736 = vadd.f32 %v422, %v735
  %v737 = vpop.f32.mrf.mxu0
  %v738 = vpop.f32.mrf.mxu0
  %v739 = vpop.f32.mrf.mxu0
  %740 = vdwg.mxu0
  %v741 = vadd.f32 %v278, %v695
  %v742 = vxor.u32 %v741, 2147483648
  %v743 = vmul.f32 %v742, 1.442695
  %v744 = vpow.pop %v743
  %v745 = vadd.f32 %v744, 1.0
  %v746 = vrcp.pop %v745
  %v747 = vmul.f32 1.0, %v746
  %v748 = vadd.f32 %v280, %v697
  %v749 = vxor.u32 %v748, 2147483648
  %v750 = vmul.f32 %v749, 1.442695
  %v751 = vpow.pop %v750
  %v752 = vadd.f32 %v751, 1.0
  %v753 = vrcp.pop %v752
  %v754 = vmul.f32 1.0, %v753
  %v755 = vmul.f32 %v747, %v736
  %v756 = vadd.f32 %v350, %v755
  %v757 = vtanh.pop %v756
  %v758 = vsub.f32 1.0, %v754
  %v759 = vmul.f32 %v758, %v757
  %v760 = vmul.f32 %v754, %v657
  %v761 = vadd.f32 %v759, %v760
  %s762 = scalar_lea.vmem %s6, 8
  %763 = vst [vmem:[%s762] sm:$0xff] %v761
  %v764 = vpack.c.bf16 %v761, %v761
  %765 = vmatprep.subr.bf16.mxu0 %v530
  %766 = vmatpush1.bf16.msra.mxu0 %v529
  %767 = vmatprep.subr.bf16.mxu0 %v527
  %768 = vmatpush1.bf16.msra.mxu0 %v526
  %769 = vmatprep.subr.bf16.mxu0 %v524
  %770 = vmatpush1.bf16.msra.mxu0 %v523
  %771 = vmatprep.subr.bf16.mxu0 %v521
  %772 = vmatpush1.bf16.msra.mxu0 %v520
  %773 = vmatprep.subr.bf16.mxu0 %v518
  %774 = vmatpush1.bf16.msra.mxu0 %v517
  %775 = vmatprep.subr.bf16.mxu0 %v515
  %776 = vmatpush1.bf16.msra.mxu0 %v514
  %777 = vmatprep.subr.bf16.mxu0 %v512
  %778 = vmatpush1.bf16.msra.mxu0 %v511
  %779 = vmatprep.subr.bf16.mxu0 %v509
  %780 = vmatpush1.bf16.msra.mxu0 %v508
  %781 = vmatprep.subr.bf16.mxu0 0
  %782 = vmatpush2.bf16.msra.mxu0 0
  %783 = vmatprep.subr.bf16.mxu0 0
  %784 = vmatpush2.bf16.msra.mxu0 0
  %785 = vmatprep.subr.bf16.mxu0 0
  %786 = vmatpush2.bf16.msra.mxu0 0
  %787 = vmatprep.subr.bf16.mxu0 0
  %788 = vmatpush2.bf16.msra.mxu0 0
  %789 = vmatprep.subr.bf16.mxu0 0
  %790 = vmatpush2.bf16.msra.mxu0 0
  %791 = vmatprep.subr.bf16.mxu0 0
  %792 = vmatpush2.bf16.msra.mxu0 0
  %793 = vmatprep.subr.bf16.mxu0 0
  %794 = vmatpush2.bf16.msra.mxu0 0
  %795 = vmatprep.subr.bf16.mxu0 0
  %796 = vmatpush2.bf16.msra.mxu0 0
  %797 = vmatprep.mubr.bf16.mxu0 0
  %798 = vmatmul.mubr.bf16.gmra.mxu0 %v764
  %v799 = vpop.f32.mrf.mxu0
  %v800 = vadd.f32 %v414, %v799
  %v801 = vpop.f32.mrf.mxu0
  %v802 = vadd.f32 %v418, %v801
  %v803 = vpop.f32.mrf.mxu0
  %v804 = vpop.f32.mrf.mxu0
  %805 = vdwg.mxu0
  %806 = vmatprep.subr.bf16.mxu0 0
  %807 = vmatpush1.bf16.msra.mxu0 %v531
  %808 = vmatprep.subr.bf16.mxu0 0
  %809 = vmatpush1.bf16.msra.mxu0 %v528
  %810 = vmatprep.subr.bf16.mxu0 0
  %811 = vmatpush1.bf16.msra.mxu0 %v525
  %812 = vmatprep.subr.bf16.mxu0 0
  %813 = vmatpush1.bf16.msra.mxu0 %v522
  %814 = vmatprep.subr.bf16.mxu0 0
  %815 = vmatpush1.bf16.msra.mxu0 %v519
  %816 = vmatprep.subr.bf16.mxu0 0
  %817 = vmatpush1.bf16.msra.mxu0 %v516
  %818 = vmatprep.subr.bf16.mxu0 0
  %819 = vmatpush1.bf16.msra.mxu0 %v513
  %820 = vmatprep.subr.bf16.mxu0 0
  %821 = vmatpush1.bf16.msra.mxu0 %v510
  %822 = vmatprep.subr.bf16.mxu0 0
  %823 = vmatpush2.bf16.msra.mxu0 0
  %824 = vmatprep.subr.bf16.mxu0 0
  %825 = vmatpush2.bf16.msra.mxu0 0
  %826 = vmatprep.subr.bf16.mxu0 0
  %827 = vmatpush2.bf16.msra.mxu0 0
  %828 = vmatprep.subr.bf16.mxu0 0
  %829 = vmatpush2.bf16.msra.mxu0 0
  %830 = vmatprep.subr.bf16.mxu0 0
  %831 = vmatpush2.bf16.msra.mxu0 0
  %832 = vmatprep.subr.bf16.mxu0 0
  %833 = vmatpush2.bf16.msra.mxu0 0
  %834 = vmatprep.subr.bf16.mxu0 0
  %835 = vmatpush2.bf16.msra.mxu0 0
  %836 = vmatprep.subr.bf16.mxu0 0
  %837 = vmatpush2.bf16.msra.mxu0 0
  %838 = vmatprep.mubr.bf16.mxu0 0
  %839 = vmatmul.mubr.bf16.gmra.mxu0 %v764
  %v840 = vpop.f32.mrf.mxu0
  %v841 = vadd.f32 %v422, %v840
  %v842 = vpop.f32.mrf.mxu0
  %v843 = vpop.f32.mrf.mxu0
  %v844 = vpop.f32.mrf.mxu0
  %845 = vdwg.mxu0
  %v846 = vadd.f32 %v284, %v800
  %v847 = vxor.u32 %v846, 2147483648
  %v848 = vmul.f32 %v847, 1.442695
  %v849 = vpow.pop %v848
  %v850 = vadd.f32 %v849, 1.0
  %v851 = vrcp.pop %v850
  %v852 = vmul.f32 1.0, %v851
  %v853 = vadd.f32 %v286, %v802
  %v854 = vxor.u32 %v853, 2147483648
  %v855 = vmul.f32 %v854, 1.442695
  %v856 = vpow.pop %v855
  %v857 = vadd.f32 %v856, 1.0
  %v858 = vrcp.pop %v857
  %v859 = vmul.f32 1.0, %v858
  %v860 = vmul.f32 %v852, %v841
  %v861 = vadd.f32 %v355, %v860
  %v862 = vtanh.pop %v861
  %v863 = vsub.f32 1.0, %v859
  %v864 = vmul.f32 %v863, %v862
  %v865 = vmul.f32 %v859, %v761
  %v866 = vadd.f32 %v864, %v865
  %s867 = scalar_lea.vmem %s6, 16
  %868 = vst [vmem:[%s867] sm:$0xff] %v866
  %v869 = vpack.c.bf16 %v866, %v866
  %870 = vmatprep.subr.bf16.mxu0 %v530
  %871 = vmatpush1.bf16.msra.mxu0 %v529
  %872 = vmatprep.subr.bf16.mxu0 %v527
  %873 = vmatpush1.bf16.msra.mxu0 %v526
  %874 = vmatprep.subr.bf16.mxu0 %v524
  %875 = vmatpush1.bf16.msra.mxu0 %v523
  %876 = vmatprep.subr.bf16.mxu0 %v521
  %877 = vmatpush1.bf16.msra.mxu0 %v520
  %878 = vmatprep.subr.bf16.mxu0 %v518
  %879 = vmatpush1.bf16.msra.mxu0 %v517
  %880 = vmatprep.subr.bf16.mxu0 %v515
  %881 = vmatpush1.bf16.msra.mxu0 %v514
  %882 = vmatprep.subr.bf16.mxu0 %v512
  %883 = vmatpush1.bf16.msra.mxu0 %v511
  %884 = vmatprep.subr.bf16.mxu0 %v509
  %885 = vmatpush1.bf16.msra.mxu0 %v508
  %886 = vmatprep.subr.bf16.mxu0 0
  %887 = vmatpush2.bf16.msra.mxu0 0
  %888 = vmatprep.subr.bf16.mxu0 0
  %889 = vmatpush2.bf16.msra.mxu0 0
  %890 = vmatprep.subr.bf16.mxu0 0
  %891 = vmatpush2.bf16.msra.mxu0 0
  %892 = vmatprep.subr.bf16.mxu0 0
  %893 = vmatpush2.bf16.msra.mxu0 0
  %894 = vmatprep.subr.bf16.mxu0 0
  %895 = vmatpush2.bf16.msra.mxu0 0
  %896 = vmatprep.subr.bf16.mxu0 0
  %897 = vmatpush2.bf16.msra.mxu0 0
  %898 = vmatprep.subr.bf16.mxu0 0
  %899 = vmatpush2.bf16.msra.mxu0 0
  %900 = vmatprep.subr.bf16.mxu0 0
  %901 = vmatpush2.bf16.msra.mxu0 0
  %902 = vmatprep.mubr.bf16.mxu0 0
  %903 = vmatmul.mubr.bf16.gmra.mxu0 %v869
  %v904 = vpop.f32.mrf.mxu0
  %v905 = vadd.f32 %v414, %v904
  %v906 = vpop.f32.mrf.mxu0
  %v907 = vadd.f32 %v418, %v906
  %v908 = vpop.f32.mrf.mxu0
  %v909 = vpop.f32.mrf.mxu0
  %910 = vdwg.mxu0
  %911 = vmatprep.subr.bf16.mxu0 0
  %912 = vmatpush1.bf16.msra.mxu0 %v531
  %913 = vmatprep.subr.bf16.mxu0 0
  %914 = vmatpush1.bf16.msra.mxu0 %v528
  %915 = vmatprep.subr.bf16.mxu0 0
  %916 = vmatpush1.bf16.msra.mxu0 %v525
  %917 = vmatprep.subr.bf16.mxu0 0
  %918 = vmatpush1.bf16.msra.mxu0 %v522
  %919 = vmatprep.subr.bf16.mxu0 0
  %920 = vmatpush1.bf16.msra.mxu0 %v519
  %921 = vmatprep.subr.bf16.mxu0 0
  %922 = vmatpush1.bf16.msra.mxu0 %v516
  %923 = vmatprep.subr.bf16.mxu0 0
  %924 = vmatpush1.bf16.msra.mxu0 %v513
  %925 = vmatprep.subr.bf16.mxu0 0
  %926 = vmatpush1.bf16.msra.mxu0 %v510
  %927 = vmatprep.subr.bf16.mxu0 0
  %928 = vmatpush2.bf16.msra.mxu0 0
  %929 = vmatprep.subr.bf16.mxu0 0
  %930 = vmatpush2.bf16.msra.mxu0 0
  %931 = vmatprep.subr.bf16.mxu0 0
  %932 = vmatpush2.bf16.msra.mxu0 0
  %933 = vmatprep.subr.bf16.mxu0 0
  %934 = vmatpush2.bf16.msra.mxu0 0
  %935 = vmatprep.subr.bf16.mxu0 0
  %936 = vmatpush2.bf16.msra.mxu0 0
  %937 = vmatprep.subr.bf16.mxu0 0
  %938 = vmatpush2.bf16.msra.mxu0 0
  %939 = vmatprep.subr.bf16.mxu0 0
  %940 = vmatpush2.bf16.msra.mxu0 0
  %941 = vmatprep.subr.bf16.mxu0 0
  %942 = vmatpush2.bf16.msra.mxu0 0
  %943 = vmatprep.mubr.bf16.mxu0 0
  %944 = vmatmul.mubr.bf16.gmra.mxu0 %v869
  %v945 = vpop.f32.mrf.mxu0
  %v946 = vadd.f32 %v422, %v945
  %v947 = vpop.f32.mrf.mxu0
  %v948 = vpop.f32.mrf.mxu0
  %v949 = vpop.f32.mrf.mxu0
  %950 = vdwg.mxu0
  %v951 = vadd.f32 %v288, %v905
  %v952 = vxor.u32 %v951, 2147483648
  %v953 = vmul.f32 %v952, 1.442695
  %v954 = vpow.pop %v953
  %v955 = vadd.f32 %v954, 1.0
  %v956 = vrcp.pop %v955
  %v957 = vmul.f32 1.0, %v956
  %v958 = vadd.f32 %v290, %v907
  %v959 = vxor.u32 %v958, 2147483648
  %v960 = vmul.f32 %v959, 1.442695
  %v961 = vpow.pop %v960
  %v962 = vadd.f32 %v961, 1.0
  %v963 = vrcp.pop %v962
  %v964 = vmul.f32 1.0, %v963
  %v965 = vmul.f32 %v957, %v946
  %v966 = vadd.f32 %v358, %v965
  %v967 = vtanh.pop %v966
  %v968 = vsub.f32 1.0, %v964
  %v969 = vmul.f32 %v968, %v967
  %v970 = vmul.f32 %v964, %v866
  %v971 = vadd.f32 %v969, %v970
  %s972 = scalar_lea.vmem %s6, 24
  %973 = vst [vmem:[%s972] sm:$0xff] %v971
  %v974 = vpack.c.bf16 %v971, %v971
  %975 = vmatprep.subr.bf16.mxu0 %v530
  %976 = vmatpush1.bf16.msra.mxu0 %v529
  %977 = vmatprep.subr.bf16.mxu0 %v527
  %978 = vmatpush1.bf16.msra.mxu0 %v526
  %979 = vmatprep.subr.bf16.mxu0 %v524
  %980 = vmatpush1.bf16.msra.mxu0 %v523
  %981 = vmatprep.subr.bf16.mxu0 %v521
  %982 = vmatpush1.bf16.msra.mxu0 %v520
  %983 = vmatprep.subr.bf16.mxu0 %v518
  %984 = vmatpush1.bf16.msra.mxu0 %v517
  %985 = vmatprep.subr.bf16.mxu0 %v515
  %986 = vmatpush1.bf16.msra.mxu0 %v514
  %987 = vmatprep.subr.bf16.mxu0 %v512
  %988 = vmatpush1.bf16.msra.mxu0 %v511
  %989 = vmatprep.subr.bf16.mxu0 %v509
  %990 = vmatpush1.bf16.msra.mxu0 %v508
  %991 = vmatprep.subr.bf16.mxu0 0
  %992 = vmatpush2.bf16.msra.mxu0 0
  %993 = vmatprep.subr.bf16.mxu0 0
  %994 = vmatpush2.bf16.msra.mxu0 0
  %995 = vmatprep.subr.bf16.mxu0 0
  %996 = vmatpush2.bf16.msra.mxu0 0
  %997 = vmatprep.subr.bf16.mxu0 0
  %998 = vmatpush2.bf16.msra.mxu0 0
  %999 = vmatprep.subr.bf16.mxu0 0
  %1000 = vmatpush2.bf16.msra.mxu0 0
  %1001 = vmatprep.subr.bf16.mxu0 0
  %1002 = vmatpush2.bf16.msra.mxu0 0
  %1003 = vmatprep.subr.bf16.mxu0 0
  %1004 = vmatpush2.bf16.msra.mxu0 0
  %1005 = vmatprep.subr.bf16.mxu0 0
  %1006 = vmatpush2.bf16.msra.mxu0 0
  %1007 = vmatprep.mubr.bf16.mxu0 0
  %1008 = vmatmul.mubr.bf16.gmra.mxu0 %v974
  %v1009 = vpop.f32.mrf.mxu0
  %v1010 = vadd.f32 %v414, %v1009
  %v1011 = vpop.f32.mrf.mxu0
  %v1012 = vadd.f32 %v418, %v1011
  %v1013 = vpop.f32.mrf.mxu0
  %v1014 = vpop.f32.mrf.mxu0
  %1015 = vdwg.mxu0
  %1016 = vmatprep.subr.bf16.mxu0 0
  %1017 = vmatpush1.bf16.msra.mxu0 %v531
  %1018 = vmatprep.subr.bf16.mxu0 0
  %1019 = vmatpush1.bf16.msra.mxu0 %v528
  %1020 = vmatprep.subr.bf16.mxu0 0
  %1021 = vmatpush1.bf16.msra.mxu0 %v525
  %1022 = vmatprep.subr.bf16.mxu0 0
  %1023 = vmatpush1.bf16.msra.mxu0 %v522
  %1024 = vmatprep.subr.bf16.mxu0 0
  %1025 = vmatpush1.bf16.msra.mxu0 %v519
  %1026 = vmatprep.subr.bf16.mxu0 0
  %1027 = vmatpush1.bf16.msra.mxu0 %v516
  %1028 = vmatprep.subr.bf16.mxu0 0
  %1029 = vmatpush1.bf16.msra.mxu0 %v513
  %1030 = vmatprep.subr.bf16.mxu0 0
  %1031 = vmatpush1.bf16.msra.mxu0 %v510
  %1032 = vmatprep.subr.bf16.mxu0 0
  %1033 = vmatpush2.bf16.msra.mxu0 0
  %1034 = vmatprep.subr.bf16.mxu0 0
  %1035 = vmatpush2.bf16.msra.mxu0 0
  %1036 = vmatprep.subr.bf16.mxu0 0
  %1037 = vmatpush2.bf16.msra.mxu0 0
  %1038 = vmatprep.subr.bf16.mxu0 0
  %1039 = vmatpush2.bf16.msra.mxu0 0
  %1040 = vmatprep.subr.bf16.mxu0 0
  %1041 = vmatpush2.bf16.msra.mxu0 0
  %1042 = vmatprep.subr.bf16.mxu0 0
  %1043 = vmatpush2.bf16.msra.mxu0 0
  %1044 = vmatprep.subr.bf16.mxu0 0
  %1045 = vmatpush2.bf16.msra.mxu0 0
  %1046 = vmatprep.subr.bf16.mxu0 0
  %1047 = vmatpush2.bf16.msra.mxu0 0
  %1048 = vmatprep.mubr.bf16.mxu0 0
  %1049 = vmatmul.mubr.bf16.gmra.mxu0 %v974
  %v1050 = vpop.f32.mrf.mxu0
  %v1051 = vadd.f32 %v422, %v1050
  %v1052 = vpop.f32.mrf.mxu0
  %v1053 = vpop.f32.mrf.mxu0
  %v1054 = vpop.f32.mrf.mxu0
  %1055 = vdwg.mxu0
  %v1056 = vadd.f32 %v294, %v1010
  %v1057 = vxor.u32 %v1056, 2147483648
  %v1058 = vmul.f32 %v1057, 1.442695
  %v1059 = vpow.pop %v1058
  %v1060 = vadd.f32 %v1059, 1.0
  %v1061 = vrcp.pop %v1060
  %v1062 = vmul.f32 1.0, %v1061
  %v1063 = vadd.f32 %v296, %v1012
  %v1064 = vxor.u32 %v1063, 2147483648
  %v1065 = vmul.f32 %v1064, 1.442695
  %v1066 = vpow.pop %v1065
  %v1067 = vadd.f32 %v1066, 1.0
  %v1068 = vrcp.pop %v1067
  %v1069 = vmul.f32 1.0, %v1068
  %v1070 = vmul.f32 %v1062, %v1051
  %v1071 = vadd.f32 %v363, %v1070
  %v1072 = vtanh.pop %v1071
  %v1073 = vsub.f32 1.0, %v1069
  %v1074 = vmul.f32 %v1073, %v1072
  %v1075 = vmul.f32 %v1069, %v971
  %v1076 = vadd.f32 %v1074, %v1075
  %s1077 = scalar_lea.vmem %s6, 32
  %1078 = vst [vmem:[%s1077] sm:$0xff] %v1076
  %v1079 = vpack.c.bf16 %v1076, %v1076
  %1080 = vmatprep.subr.bf16.mxu0 %v530
  %1081 = vmatpush1.bf16.msra.mxu0 %v529
  %1082 = vmatprep.subr.bf16.mxu0 %v527
  %1083 = vmatpush1.bf16.msra.mxu0 %v526
  %1084 = vmatprep.subr.bf16.mxu0 %v524
  %1085 = vmatpush1.bf16.msra.mxu0 %v523
  %1086 = vmatprep.subr.bf16.mxu0 %v521
  %1087 = vmatpush1.bf16.msra.mxu0 %v520
  %1088 = vmatprep.subr.bf16.mxu0 %v518
  %1089 = vmatpush1.bf16.msra.mxu0 %v517
  %1090 = vmatprep.subr.bf16.mxu0 %v515
  %1091 = vmatpush1.bf16.msra.mxu0 %v514
  %1092 = vmatprep.subr.bf16.mxu0 %v512
  %1093 = vmatpush1.bf16.msra.mxu0 %v511
  %1094 = vmatprep.subr.bf16.mxu0 %v509
  %1095 = vmatpush1.bf16.msra.mxu0 %v508
  %1096 = vmatprep.subr.bf16.mxu0 0
  %1097 = vmatpush2.bf16.msra.mxu0 0
  %1098 = vmatprep.subr.bf16.mxu0 0
  %1099 = vmatpush2.bf16.msra.mxu0 0
  %1100 = vmatprep.subr.bf16.mxu0 0
  %1101 = vmatpush2.bf16.msra.mxu0 0
  %1102 = vmatprep.subr.bf16.mxu0 0
  %1103 = vmatpush2.bf16.msra.mxu0 0
  %1104 = vmatprep.subr.bf16.mxu0 0
  %1105 = vmatpush2.bf16.msra.mxu0 0
  %1106 = vmatprep.subr.bf16.mxu0 0
  %1107 = vmatpush2.bf16.msra.mxu0 0
  %1108 = vmatprep.subr.bf16.mxu0 0
  %1109 = vmatpush2.bf16.msra.mxu0 0
  %1110 = vmatprep.subr.bf16.mxu0 0
  %1111 = vmatpush2.bf16.msra.mxu0 0
  %1112 = vmatprep.mubr.bf16.mxu0 0
  %1113 = vmatmul.mubr.bf16.gmra.mxu0 %v1079
  %v1114 = vpop.f32.mrf.mxu0
  %v1115 = vadd.f32 %v414, %v1114
  %v1116 = vpop.f32.mrf.mxu0
  %v1117 = vadd.f32 %v418, %v1116
  %v1118 = vpop.f32.mrf.mxu0
  %v1119 = vpop.f32.mrf.mxu0
  %1120 = vdwg.mxu0
  %1121 = vmatprep.subr.bf16.mxu0 0
  %1122 = vmatpush1.bf16.msra.mxu0 %v531
  %1123 = vmatprep.subr.bf16.mxu0 0
  %1124 = vmatpush1.bf16.msra.mxu0 %v528
  %1125 = vmatprep.subr.bf16.mxu0 0
  %1126 = vmatpush1.bf16.msra.mxu0 %v525
  %1127 = vmatprep.subr.bf16.mxu0 0
  %1128 = vmatpush1.bf16.msra.mxu0 %v522
  %1129 = vmatprep.subr.bf16.mxu0 0
  %1130 = vmatpush1.bf16.msra.mxu0 %v519
  %1131 = vmatprep.subr.bf16.mxu0 0
  %1132 = vmatpush1.bf16.msra.mxu0 %v516
  %1133 = vmatprep.subr.bf16.mxu0 0
  %1134 = vmatpush1.bf16.msra.mxu0 %v513
  %1135 = vmatprep.subr.bf16.mxu0 0
  %1136 = vmatpush1.bf16.msra.mxu0 %v510
  %1137 = vmatprep.subr.bf16.mxu0 0
  %1138 = vmatpush2.bf16.msra.mxu0 0
  %1139 = vmatprep.subr.bf16.mxu0 0
  %1140 = vmatpush2.bf16.msra.mxu0 0
  %1141 = vmatprep.subr.bf16.mxu0 0
  %1142 = vmatpush2.bf16.msra.mxu0 0
  %1143 = vmatprep.subr.bf16.mxu0 0
  %1144 = vmatpush2.bf16.msra.mxu0 0
  %1145 = vmatprep.subr.bf16.mxu0 0
  %1146 = vmatpush2.bf16.msra.mxu0 0
  %1147 = vmatprep.subr.bf16.mxu0 0
  %1148 = vmatpush2.bf16.msra.mxu0 0
  %1149 = vmatprep.subr.bf16.mxu0 0
  %1150 = vmatpush2.bf16.msra.mxu0 0
  %1151 = vmatprep.subr.bf16.mxu0 0
  %1152 = vmatpush2.bf16.msra.mxu0 0
  %1153 = vmatprep.mubr.bf16.mxu0 0
  %1154 = vmatmul.mubr.bf16.gmra.mxu0 %v1079
  %v1155 = vpop.f32.mrf.mxu0
  %v1156 = vadd.f32 %v422, %v1155
  %v1157 = vpop.f32.mrf.mxu0
  %v1158 = vpop.f32.mrf.mxu0
  %v1159 = vpop.f32.mrf.mxu0
  %1160 = vdwg.mxu0
  %v1161 = vadd.f32 %v298, %v1115
  %v1162 = vxor.u32 %v1161, 2147483648
  %v1163 = vmul.f32 %v1162, 1.442695
  %v1164 = vpow.pop %v1163
  %v1165 = vadd.f32 %v1164, 1.0
  %v1166 = vrcp.pop %v1165
  %v1167 = vmul.f32 1.0, %v1166
  %v1168 = vadd.f32 %v300, %v1117
  %v1169 = vxor.u32 %v1168, 2147483648
  %v1170 = vmul.f32 %v1169, 1.442695
  %v1171 = vpow.pop %v1170
  %v1172 = vadd.f32 %v1171, 1.0
  %v1173 = vrcp.pop %v1172
  %v1174 = vmul.f32 1.0, %v1173
  %v1175 = vmul.f32 %v1167, %v1156
  %v1176 = vadd.f32 %v366, %v1175
  %v1177 = vtanh.pop %v1176
  %v1178 = vsub.f32 1.0, %v1174
  %v1179 = vmul.f32 %v1178, %v1177
  %v1180 = vmul.f32 %v1174, %v1076
  %v1181 = vadd.f32 %v1179, %v1180
  %s1182 = scalar_lea.vmem %s6, 40
  %1183 = vst [vmem:[%s1182] sm:$0xff] %v1181
  %v1184 = vpack.c.bf16 %v1181, %v1181
  %1185 = vmatprep.subr.bf16.mxu0 %v530
  %1186 = vmatpush1.bf16.msra.mxu0 %v529
  %1187 = vmatprep.subr.bf16.mxu0 %v527
  %1188 = vmatpush1.bf16.msra.mxu0 %v526
  %1189 = vmatprep.subr.bf16.mxu0 %v524
  %1190 = vmatpush1.bf16.msra.mxu0 %v523
  %1191 = vmatprep.subr.bf16.mxu0 %v521
  %1192 = vmatpush1.bf16.msra.mxu0 %v520
  %1193 = vmatprep.subr.bf16.mxu0 %v518
  %1194 = vmatpush1.bf16.msra.mxu0 %v517
  %1195 = vmatprep.subr.bf16.mxu0 %v515
  %1196 = vmatpush1.bf16.msra.mxu0 %v514
  %1197 = vmatprep.subr.bf16.mxu0 %v512
  %1198 = vmatpush1.bf16.msra.mxu0 %v511
  %1199 = vmatprep.subr.bf16.mxu0 %v509
  %1200 = vmatpush1.bf16.msra.mxu0 %v508
  %1201 = vmatprep.subr.bf16.mxu0 0
  %1202 = vmatpush2.bf16.msra.mxu0 0
  %1203 = vmatprep.subr.bf16.mxu0 0
  %1204 = vmatpush2.bf16.msra.mxu0 0
  %1205 = vmatprep.subr.bf16.mxu0 0
  %1206 = vmatpush2.bf16.msra.mxu0 0
  %1207 = vmatprep.subr.bf16.mxu0 0
  %1208 = vmatpush2.bf16.msra.mxu0 0
  %1209 = vmatprep.subr.bf16.mxu0 0
  %1210 = vmatpush2.bf16.msra.mxu0 0
  %1211 = vmatprep.subr.bf16.mxu0 0
  %1212 = vmatpush2.bf16.msra.mxu0 0
  %1213 = vmatprep.subr.bf16.mxu0 0
  %1214 = vmatpush2.bf16.msra.mxu0 0
  %1215 = vmatprep.subr.bf16.mxu0 0
  %1216 = vmatpush2.bf16.msra.mxu0 0
  %1217 = vmatprep.mubr.bf16.mxu0 0
  %1218 = vmatmul.mubr.bf16.gmra.mxu0 %v1184
  %v1219 = vpop.f32.mrf.mxu0
  %v1220 = vadd.f32 %v414, %v1219
  %v1221 = vpop.f32.mrf.mxu0
  %v1222 = vadd.f32 %v418, %v1221
  %v1223 = vpop.f32.mrf.mxu0
  %v1224 = vpop.f32.mrf.mxu0
  %1225 = vdwg.mxu0
  %1226 = vmatprep.subr.bf16.mxu0 0
  %1227 = vmatpush1.bf16.msra.mxu0 %v531
  %1228 = vmatprep.subr.bf16.mxu0 0
  %1229 = vmatpush1.bf16.msra.mxu0 %v528
  %1230 = vmatprep.subr.bf16.mxu0 0
  %1231 = vmatpush1.bf16.msra.mxu0 %v525
  %1232 = vmatprep.subr.bf16.mxu0 0
  %1233 = vmatpush1.bf16.msra.mxu0 %v522
  %1234 = vmatprep.subr.bf16.mxu0 0
  %1235 = vmatpush1.bf16.msra.mxu0 %v519
  %1236 = vmatprep.subr.bf16.mxu0 0
  %1237 = vmatpush1.bf16.msra.mxu0 %v516
  %1238 = vmatprep.subr.bf16.mxu0 0
  %1239 = vmatpush1.bf16.msra.mxu0 %v513
  %1240 = vmatprep.subr.bf16.mxu0 0
  %1241 = vmatpush1.bf16.msra.mxu0 %v510
  %1242 = vmatprep.subr.bf16.mxu0 0
  %1243 = vmatpush2.bf16.msra.mxu0 0
  %1244 = vmatprep.subr.bf16.mxu0 0
  %1245 = vmatpush2.bf16.msra.mxu0 0
  %1246 = vmatprep.subr.bf16.mxu0 0
  %1247 = vmatpush2.bf16.msra.mxu0 0
  %1248 = vmatprep.subr.bf16.mxu0 0
  %1249 = vmatpush2.bf16.msra.mxu0 0
  %1250 = vmatprep.subr.bf16.mxu0 0
  %1251 = vmatpush2.bf16.msra.mxu0 0
  %1252 = vmatprep.subr.bf16.mxu0 0
  %1253 = vmatpush2.bf16.msra.mxu0 0
  %1254 = vmatprep.subr.bf16.mxu0 0
  %1255 = vmatpush2.bf16.msra.mxu0 0
  %1256 = vmatprep.subr.bf16.mxu0 0
  %1257 = vmatpush2.bf16.msra.mxu0 0
  %1258 = vmatprep.mubr.bf16.mxu0 0
  %1259 = vmatmul.mubr.bf16.gmra.mxu0 %v1184
  %v1260 = vpop.f32.mrf.mxu0
  %v1261 = vadd.f32 %v422, %v1260
  %v1262 = vpop.f32.mrf.mxu0
  %v1263 = vpop.f32.mrf.mxu0
  %v1264 = vpop.f32.mrf.mxu0
  %1265 = vdwg.mxu0
  %v1266 = vadd.f32 %v304, %v1220
  %v1267 = vxor.u32 %v1266, 2147483648
  %v1268 = vmul.f32 %v1267, 1.442695
  %v1269 = vpow.pop %v1268
  %v1270 = vadd.f32 %v1269, 1.0
  %v1271 = vrcp.pop %v1270
  %v1272 = vmul.f32 1.0, %v1271
  %v1273 = vadd.f32 %v306, %v1222
  %v1274 = vxor.u32 %v1273, 2147483648
  %v1275 = vmul.f32 %v1274, 1.442695
  %v1276 = vpow.pop %v1275
  %v1277 = vadd.f32 %v1276, 1.0
  %v1278 = vrcp.pop %v1277
  %v1279 = vmul.f32 1.0, %v1278
  %v1280 = vmul.f32 %v1272, %v1261
  %v1281 = vadd.f32 %v371, %v1280
  %v1282 = vtanh.pop %v1281
  %v1283 = vsub.f32 1.0, %v1279
  %v1284 = vmul.f32 %v1283, %v1282
  %v1285 = vmul.f32 %v1279, %v1181
  %v1286 = vadd.f32 %v1284, %v1285
  %s1287 = scalar_lea.vmem %s6, 48
  %1288 = vst [vmem:[%s1287] sm:$0xff] %v1286
  %v1289 = vpack.c.bf16 %v1286, %v1286
  %1290 = vmatprep.subr.bf16.mxu0 %v530
  %1291 = vmatpush1.bf16.msra.mxu0 %v529
  %1292 = vmatprep.subr.bf16.mxu0 %v527
  %1293 = vmatpush1.bf16.msra.mxu0 %v526
  %1294 = vmatprep.subr.bf16.mxu0 %v524
  %1295 = vmatpush1.bf16.msra.mxu0 %v523
  %1296 = vmatprep.subr.bf16.mxu0 %v521
  %1297 = vmatpush1.bf16.msra.mxu0 %v520
  %1298 = vmatprep.subr.bf16.mxu0 %v518
  %1299 = vmatpush1.bf16.msra.mxu0 %v517
  %1300 = vmatprep.subr.bf16.mxu0 %v515
  %1301 = vmatpush1.bf16.msra.mxu0 %v514
  %1302 = vmatprep.subr.bf16.mxu0 %v512
  %1303 = vmatpush1.bf16.msra.mxu0 %v511
  %1304 = vmatprep.subr.bf16.mxu0 %v509
  %1305 = vmatpush1.bf16.msra.mxu0 %v508
  %1306 = vmatprep.subr.bf16.mxu0 0
  %1307 = vmatpush2.bf16.msra.mxu0 0
  %1308 = vmatprep.subr.bf16.mxu0 0
  %1309 = vmatpush2.bf16.msra.mxu0 0
  %1310 = vmatprep.subr.bf16.mxu0 0
  %1311 = vmatpush2.bf16.msra.mxu0 0
  %1312 = vmatprep.subr.bf16.mxu0 0
  %1313 = vmatpush2.bf16.msra.mxu0 0
  %1314 = vmatprep.subr.bf16.mxu0 0
  %1315 = vmatpush2.bf16.msra.mxu0 0
  %1316 = vmatprep.subr.bf16.mxu0 0
  %1317 = vmatpush2.bf16.msra.mxu0 0
  %1318 = vmatprep.subr.bf16.mxu0 0
  %1319 = vmatpush2.bf16.msra.mxu0 0
  %1320 = vmatprep.subr.bf16.mxu0 0
  %1321 = vmatpush2.bf16.msra.mxu0 0
  %1322 = vmatprep.mubr.bf16.mxu0 0
  %1323 = vmatmul.mubr.bf16.gmra.mxu0 %v1289
  %v1324 = vpop.f32.mrf.mxu0
  %v1325 = vadd.f32 %v414, %v1324
  %v1326 = vpop.f32.mrf.mxu0
  %v1327 = vadd.f32 %v418, %v1326
  %v1328 = vpop.f32.mrf.mxu0
  %v1329 = vpop.f32.mrf.mxu0
  %1330 = vdwg.mxu0
  %1331 = vmatprep.subr.bf16.mxu0 0
  %1332 = vmatpush1.bf16.msra.mxu0 %v531
  %1333 = vmatprep.subr.bf16.mxu0 0
  %1334 = vmatpush1.bf16.msra.mxu0 %v528
  %1335 = vmatprep.subr.bf16.mxu0 0
  %1336 = vmatpush1.bf16.msra.mxu0 %v525
  %1337 = vmatprep.subr.bf16.mxu0 0
  %1338 = vmatpush1.bf16.msra.mxu0 %v522
  %1339 = vmatprep.subr.bf16.mxu0 0
  %1340 = vmatpush1.bf16.msra.mxu0 %v519
  %1341 = vmatprep.subr.bf16.mxu0 0
  %1342 = vmatpush1.bf16.msra.mxu0 %v516
  %1343 = vmatprep.subr.bf16.mxu0 0
  %1344 = vmatpush1.bf16.msra.mxu0 %v513
  %1345 = vmatprep.subr.bf16.mxu0 0
  %1346 = vmatpush1.bf16.msra.mxu0 %v510
  %1347 = vmatprep.subr.bf16.mxu0 0
  %1348 = vmatpush2.bf16.msra.mxu0 0
  %1349 = vmatprep.subr.bf16.mxu0 0
  %1350 = vmatpush2.bf16.msra.mxu0 0
  %1351 = vmatprep.subr.bf16.mxu0 0
  %1352 = vmatpush2.bf16.msra.mxu0 0
  %1353 = vmatprep.subr.bf16.mxu0 0
  %1354 = vmatpush2.bf16.msra.mxu0 0
  %1355 = vmatprep.subr.bf16.mxu0 0
  %1356 = vmatpush2.bf16.msra.mxu0 0
  %1357 = vmatprep.subr.bf16.mxu0 0
  %1358 = vmatpush2.bf16.msra.mxu0 0
  %1359 = vmatprep.subr.bf16.mxu0 0
  %1360 = vmatpush2.bf16.msra.mxu0 0
  %1361 = vmatprep.subr.bf16.mxu0 0
  %1362 = vmatpush2.bf16.msra.mxu0 0
  %1363 = vmatprep.mubr.bf16.mxu0 0
  %1364 = vmatmul.mubr.bf16.gmra.mxu0 %v1289
  %v1365 = vpop.f32.mrf.mxu0
  %v1366 = vadd.f32 %v422, %v1365
  %v1367 = vpop.f32.mrf.mxu0
  %v1368 = vpop.f32.mrf.mxu0
  %v1369 = vpop.f32.mrf.mxu0
  %1370 = vdwg.mxu0
  %v1371 = vadd.f32 %v308, %v1325
  %v1372 = vxor.u32 %v1371, 2147483648
  %v1373 = vmul.f32 %v1372, 1.442695
  %v1374 = vpow.pop %v1373
  %v1375 = vadd.f32 %v1374, 1.0
  %v1376 = vrcp.pop %v1375
  %v1377 = vmul.f32 1.0, %v1376
  %v1378 = vadd.f32 %v310, %v1327
  %v1379 = vxor.u32 %v1378, 2147483648
  %v1380 = vmul.f32 %v1379, 1.442695
  %v1381 = vpow.pop %v1380
  %v1382 = vadd.f32 %v1381, 1.0
  %v1383 = vrcp.pop %v1382
  %v1384 = vmul.f32 1.0, %v1383
  %v1385 = vmul.f32 %v1377, %v1366
  %v1386 = vadd.f32 %v374, %v1385
  %v1387 = vtanh.pop %v1386
  %v1388 = vsub.f32 1.0, %v1384
  %v1389 = vmul.f32 %v1388, %v1387
  %v1390 = vmul.f32 %v1384, %v1286
  %v1391 = vadd.f32 %v1389, %v1390
  %s1392 = scalar_lea.vmem %s6, 56
  %1393 = vst [vmem:[%s1392] sm:$0xff] %v1391
  %1394 = vst [vmem:[#allocation2] sm:$0xff] %v1391
  // Predicated region
  $region30: #{encoder_rnn_forward.1} parent=0 // pred_check
    _
  $region31: #{encoder_rnn_forward.1} parent=0 // pred_check_branch
    %1396 = sbr.rel (0) target = $region33
  $region32: #{encoder_rnn_forward.1} parent=0 // pred_region
    _
  $region33: #{encoder_rnn_forward.1} parent=0 // pred_fallthru
    _
  // Predicated region
  $region34: #{encoder_rnn_forward.1} parent=0 // pred_check
    _
  $region35: #{encoder_rnn_forward.1} parent=0 // pred_check_branch
    %1398 = sbr.rel (0) target = $region37
  $region36: #{encoder_rnn_forward.1} parent=0 // pred_region
    _
  $region37: #{encoder_rnn_forward.1} parent=0 // pred_fallthru
    _

</llo_original>
